<compile_context>
chip_gen: v5e
topology: v5e:2x2
jax: 0.10.0
libtpu: 0.0.40
codegen_flags: <defaults>
</compile_context>

<pallas_src>
import numpy as np
import jax
import jax.numpy as jnp
from jax import lax
from jax.experimental import pallas as pl
from jax.experimental.pallas import tpu as pltpu

# ---- hyperparameters implied by DigitRNN.__init__ ---------------------------
OUTPUT_SIZE = 32                 # embedding_size == output_size
NUM_ENTITIES = 20                # embedding table rows
HIDDEN = OUTPUT_SIZE // 2        # per-direction LSTM hidden size
MAX_LENGTH = 32                  # T
SUBLANE = 8                      # batch tile = one vreg sublane height
STRING_DICT = {'0': 0, '1': 1, '2': 2, '3': 3, '4': 4, '5': 5, '6': 6,
               '7': 7, '8': 8, '9': 9, '.': 10, '-': 11, '[PAD]': 12}


# ---- host-side glue: number -> padded char-id sequence ----------------------
# TODO(synk): Python string tokenization (str(num) -> char ids) has no device /
# Pallas equivalent; it stays on host exactly as in the PyTorch forward.
# (Values that stringify with 'e'/'+' — scientific notation — would KeyError,
# same fragility as the original PyTorch path.)
def tokenize(values):
    values = np.asarray(values).reshape(-1)
    batched_ids = []
    for num in values:
        num_string = str(float(num))
        num_ids = [STRING_DICT[c] for c in num_string]
        while len(num_ids) < MAX_LENGTH:
            num_ids.append(STRING_DICT['[PAD]'])
        num_ids = num_ids[:MAX_LENGTH]
        batched_ids.append(num_ids)
    return np.array(batched_ids, dtype=np.int32)


# ---- host-side weight preparation --------------------------------------------
def _reorder_gates(w):
    """Permute PyTorch gate blocks [i, f, g, o] -> [i, f, o, g] along axis 0."""
    H = w.shape[0] // 4
    return jnp.concatenate([w[:2 * H], w[3 * H:4 * H], w[2 * H:3 * H]], axis=0)


def _prescale_ifo(w):
    """Scale i/f/o gate rows by 0.5 (layout [i,f,o,g]) so that in-kernel
    sigmoid(z) == 0.5 + 0.5*tanh(pre-scaled z).  Exact in FP (power of two)."""
    H = w.shape[0] // 4
    s = jnp.concatenate(
        [jnp.full((3 * H,), 0.5, jnp.float32), jnp.ones((H,), jnp.float32)])
    return w * (s[:, None] if w.ndim == 2 else s)


def _prepare_weights(params):
    wih_f = _prescale_ifo(_reorder_gates(params["wih_f"]))          # (4H, E)
    wih_b = _prescale_ifo(_reorder_gates(params["wih_b"]))          # (4H, E)
    w_in = jnp.concatenate([wih_f.T, wih_b.T], axis=1)              # (E, 8H)
    w_in = w_in.astype(jnp.float32)
    whh_b = _prescale_ifo(_reorder_gates(params["whh_b"])).T        # (H, 4H)
    whh_b = whh_b.astype(jnp.float32)
    b_f = _prescale_ifo(_reorder_gates(params["bih_f"] + params["bhh_f"]))
    b_b = _prescale_ifo(_reorder_gates(params["bih_b"] + params["bhh_b"]))
    return (w_in, whh_b,
            b_f.reshape(1, -1).astype(jnp.float32),
            b_b.reshape(1, -1).astype(jnp.float32))


# ---- Pallas kernel: bidirectional LSTM, emit output at time step 0 ----------
def bilstm_t0_kernel(xw_ref,      # (T, Bt, 8H) pre-projected, pre-scaled gates
                                  #             lanes [0:4H]=fwd, [4H:8H]=bwd,
                                  #             gate order [i, f, o, g]
                     whh_b_ref,   # (H, 4H)     bwd hidden->gates (pre-scaled)
                     b_f_ref,     # (1, 4H)     fwd fused bias (pre-scaled)
                     b_b_ref,     # (1, 4H)     bwd fused bias (pre-scaled)
                     out_ref):    # (Bt, 2H)
    T, Bt, G2 = xw_ref.shape
    G = G2 // 2
    H = G // 4

    whh_b = whh_b_ref[...]                                      # (H, 4H)
    # Hoisted bias broadcasts (JAX does not CSE broadcast_in_dim).
    b_f = jnp.broadcast_to(b_f_ref[...], (Bt, G))
    b_b = jnp.broadcast_to(b_b_ref[...], (Bt, G))

    # Hoisted lane masks for the fused activation affine:
    #   i/f/o lanes: sigmoid(z) = 0.5 + 0.5*tanh(z_scaled)  (scale folded in)
    #   g    lanes: tanh(z)
    lane = lax.broadcasted_iota(jnp.int32, (Bt, G), dimension=1)
    is_ifo = lane < 3 * H
    a_scale = jnp.where(is_ifo, 0.5, 1.0).astype(jnp.float32)
    a_shift = jnp.where(is_ifo, 0.5, 0.0).astype(jnp.float32)

    def activate(z):
        t = jnp.tanh(z)                       # single EUP push for all 4 gates
        return t * a_scale + a_shift          # cheap VPU affine

    # ---- forward direction, t = 0 only, zero initial state -------------------
    # h = 0 -> no h@Whh matmul; c = 0 -> f*c term vanishes.
    x0 = xw_ref[0]                                              # (Bt, 2G)
    a0 = activate(x0[:, :G] + b_f)
    c_f0 = a0[:, :H] * a0[:, 3 * H:]                            # i * g
    h_f0 = a0[:, 2 * H:3 * H] * jnp.tanh(c_f0)                  # o * tanh(c)

    # ---- backward direction: consume t = T-1 .. 0, fully unrolled ------------
    # Per-step vld from the pipelined VMEM input ref keeps vreg pressure low
    # (the full (T,Bt,2G) operand is never held live across the unroll).
    # TODO(synk): whh_b could be held weight-stationary on the MXU via
    # pltpu.matmul_push_rhs/matmul_acc_lhs/matmul_pop; kept as jnp.dot because
    # per-step accumulator-reset semantics of the explicit path are fragile.
    h = jnp.zeros((Bt, H), jnp.float32)
    c = jnp.zeros((Bt, H), jnp.float32)
    for step in range(T):                       # static unroll, static indices
        t_idx = T - 1 - step
        x_row = xw_ref[t_idx]                                   # (Bt, 2G)
        z = (x_row[:, G:]
             + jnp.dot(h, whh_b, preferred_element_type=jnp.float32)
             + b_b)
        a = activate(z)                                         # (Bt, 4H)
        c = a[:, H:2 * H] * c + a[:, :H] * a[:, 3 * H:]         # f*c + i*g
        h = a[:, 2 * H:3 * H] * jnp.tanh(c)                     # o * tanh(c)

    # ---- single store (sub-128-lane masked vst; negligible at this size) -----
    out_ref[...] = jnp.concatenate([h_f0, h], axis=-1)


def bilstm_t0(xw_tbe, whh_b, b_f, b_b):
    T, Bp, G2 = xw_tbe.shape
    H = whh_b.shape[0]
    BT = SUBLANE                                 # batch tile (sublane height)
    assert Bp % BT == 0
    return pl.pallas_call(
        bilstm_t0_kernel,
        out_shape=jax.ShapeDtypeStruct((Bp, 2 * H), jnp.float32),
        grid=(Bp // BT,),                        # batch tiles are independent
        in_specs=[
            pl.BlockSpec((T, BT, G2), lambda i: (0, i, 0)),
            pl.BlockSpec(whh_b.shape, lambda i: (0, 0)),
            pl.BlockSpec(b_f.shape, lambda i: (0, 0)),
            pl.BlockSpec(b_b.shape, lambda i: (0, 0)),
        ],
        out_specs=pl.BlockSpec((BT, 2 * H), lambda i: (i, 0)),
        compiler_params=pltpu.CompilerParams(
            dimension_semantics=("parallel",)),  # shards across TCs on v7x
    )(xw_tbe, whh_b, b_f, b_b)


# ---- full DigitRNN forward ---------------------------------------------------
def digit_rnn_forward(values, params):
    ids = tokenize(values)                                   # (B, T) host int32
    B = ids.shape[0]
    Bp = max(SUBLANE, ((B + SUBLANE - 1) // SUBLANE) * SUBLANE)
    if Bp != B:                                              # pad batch to tile
        pad = np.full((Bp - B, MAX_LENGTH), STRING_DICT['[PAD]'], np.int32)
        ids = np.concatenate([ids, pad], axis=0)
    ids = jnp.asarray(ids)

    w_in, whh_b, b_f, b_b = _prepare_weights(params)

    # Fold the input projection into the 20-row embedding table (one tiny
    # (20,32)@(32,128) matmul outside the hot path); gather lane-dense gate
    # pre-activations directly.  take(E, ids) @ W == take(E @ W, ids).
    xw_table = jnp.dot(params["emb_table"].astype(jnp.float32), w_in)  # (20,8H)
    xw = jnp.take(xw_table, ids, axis=0)                     # (Bp, T, 8H)
    xw_tbe = jnp.transpose(xw, (1, 0, 2))                    # (T, Bp, 8H)

    out = bilstm_t0(xw_tbe, whh_b, b_f, b_b)                 # (Bp, 2H)
    return out[:B]                                           # (B, 2H)


# ---- pure-JAX reference (for correctness check; original gate order) --------
def reference_forward(values, params):
    ids = jnp.asarray(tokenize(values))
    emb = jnp.take(params["emb_table"], ids, axis=0)         # (B, T, E)
    x_tbe = jnp.transpose(emb, (1, 0, 2)).astype(jnp.float32)
    B = x_tbe.shape[1]
    H = HIDDEN

    def run_dir(x_seq, wih, whh, bih, bhh):
        b = bih + bhh

        def step(carry, x_t):
            h, c = carry
            gates = x_t @ wih.T + h @ whh.T + b
            i = jax.nn.sigmoid(gates[:, 0 * H:1 * H])
            f = jax.nn.sigmoid(gates[:, 1 * H:2 * H])
            g = jnp.tanh(gates[:, 2 * H:3 * H])
            o = jax.nn.sigmoid(gates[:, 3 * H:4 * H])
            c_new = f * c + i * g
            h_new = o * jnp.tanh(c_new)
            return (h_new, c_new), h_new

        zeros = jnp.zeros((B, H), jnp.float32)
        _, hs = lax.scan(step, (zeros, zeros), x_seq)
        return hs                                            # (T, B, H)

    hs_f = run_dir(x_tbe, params["wih_f"], params["whh_f"],
                   params["bih_f"], params["bhh_f"])
    hs_b = run_dir(x_tbe[::-1], params["wih_b"], params["whh_b"],
                   params["bih_b"], params["bhh_b"])[::-1]
    return jnp.concatenate([hs_f[0], hs_b[0]], axis=-1)      # (B, 2H)


# ---- deterministic parameter init (matches PyTorch shapes) -------------------
def init_params(key):
    E, H = OUTPUT_SIZE, HIDDEN
    k = 1.0 / np.sqrt(H)
    keys = jax.random.split(key, 9)
    u = lambda kk, shape: jax.random.uniform(kk, shape, jnp.float32, -k, k)
    return {
        "emb_table": jax.random.normal(keys[0], (NUM_ENTITIES, E), jnp.float32),
        "wih_f": u(keys[1], (4 * H, E)),
        "whh_f": u(keys[2], (4 * H, H)),
        "bih_f": u(keys[3], (4 * H,)),
        "bhh_f": u(keys[4], (4 * H,)),
        "wih_b": u(keys[5], (4 * H, E)),
        "whh_b": u(keys[6], (4 * H, H)),
        "bih_b": u(keys[7], (4 * H,)),
        "bhh_b": u(keys[8], (4 * H,)),
    }


if __name__ == "__main__":
    key = jax.random.PRNGKey(0)
    pkey, xkey = jax.random.split(key)
    params = init_params(pkey)

    # deterministic example input: 4 numeric values (DigitRNN tokenizes them)
    raw = jax.random.uniform(xkey, (4,), jnp.float32, -100.0, 100.0)
    values = [round(float(v), 3) for v in np.asarray(raw)]

    out = digit_rnn_forward(values, params)
    out = jax.block_until_ready(out)

    ref = jax.block_until_ready(reference_forward(values, params))
    assert out.shape == (4, OUTPUT_SIZE)
    np.testing.assert_allclose(np.asarray(out), np.asarray(ref),
                               rtol=2e-5, atol=2e-5)
    print("KERNEL_OK")
</pallas_src>

<mosaic_0001>
module attributes {stable_mosaic.version = 11 : i64} {
  func.func @bilstm_t0_kernel(%arg0: i32, %arg1: memref<32x8x128xf32, #tpu.memory_space<vmem>>, %arg2: memref<16x64xf32, #tpu.memory_space<vmem>>, %arg3: memref<1x64xf32, #tpu.memory_space<vmem>>, %arg4: memref<1x64xf32, #tpu.memory_space<vmem>>, %arg5: memref<8x32xf32, #tpu.memory_space<vmem>>) attributes {dimension_semantics = [#tpu.dimension_semantics<parallel>], iteration_bounds = array<i64: 1>, scalar_prefetch = 0 : i64, scratch_operands = 0 : i64, tpu.core_type = #tpu.core_type<tc>, window_params = [{transform_indices = @transform_0, window_bounds = array<i64: 32, 8, 128>}, {pipeline_mode = #tpu.pipeline_mode<synchronous>, transform_indices = @transform_1, window_bounds = array<i64: 16, 64>}, {pipeline_mode = #tpu.pipeline_mode<synchronous>, transform_indices = @transform_2, window_bounds = array<i64: 1, 64>}, {pipeline_mode = #tpu.pipeline_mode<synchronous>, transform_indices = @transform_3, window_bounds = array<i64: 1, 64>}, {transform_indices = @transform_4, window_bounds = array<i64: 8, 32>}]} {
    %c0 = arith.constant 0 : index
    %c0_0 = arith.constant 0 : index
    %0 = vector.load %arg2[%c0, %c0_0] : memref<16x64xf32, #tpu.memory_space<vmem>>, vector<16x64xf32>
    %c0_1 = arith.constant 0 : index
    %c0_2 = arith.constant 0 : index
    %1 = vector.load %arg3[%c0_1, %c0_2] : memref<1x64xf32, #tpu.memory_space<vmem>>, vector<1x64xf32>
    %2 = vector.shape_cast %1 : vector<1x64xf32> to vector<1x64xf32>
    %3 = vector.broadcast %2 : vector<1x64xf32> to vector<8x64xf32>
    %c0_3 = arith.constant 0 : index
    %c0_4 = arith.constant 0 : index
    %4 = vector.load %arg4[%c0_3, %c0_4] : memref<1x64xf32, #tpu.memory_space<vmem>>, vector<1x64xf32>
    %5 = vector.shape_cast %4 : vector<1x64xf32> to vector<1x64xf32>
    %6 = vector.broadcast %5 : vector<1x64xf32> to vector<8x64xf32>
    %7 = tpu.iota {dimensions = array<i32: 1>} : vector<8x64xi32>
    %c48_i32 = arith.constant 48 : i32
    %8 = vector.broadcast %c48_i32 : i32 to vector<8x64xi32>
    %9 = arith.cmpi slt, %7, %8 : vector<8x64xi32>
    %cst = arith.constant 5.000000e-01 : f32
    %cst_5 = arith.constant 1.000000e+00 : f32
    %10 = vector.broadcast %cst : f32 to vector<8x64xf32>
    %11 = vector.broadcast %cst_5 : f32 to vector<8x64xf32>
    %12 = arith.select %9, %10, %11 : vector<8x64xi1>, vector<8x64xf32>
    %cst_6 = arith.constant 5.000000e-01 : f32
    %cst_7 = arith.constant 0.000000e+00 : f32
    %13 = vector.broadcast %cst_6 : f32 to vector<8x64xf32>
    %14 = vector.broadcast %cst_7 : f32 to vector<8x64xf32>
    %15 = arith.select %9, %13, %14 : vector<8x64xi1>, vector<8x64xf32>
    %c0_8 = arith.constant 0 : index
    %c0_9 = arith.constant 0 : index
    %c0_10 = arith.constant 0 : index
    %16 = vector.load %arg1[%c0_8, %c0_9, %c0_10] : memref<32x8x128xf32, #tpu.memory_space<vmem>>, vector<1x8x128xf32>
    %17 = vector.shape_cast %16 : vector<1x8x128xf32> to vector<8x128xf32>
    %18 = vector.extract_strided_slice %17 {offsets = [0, 0], sizes = [8, 64], strides = [1, 1]} : vector<8x128xf32> to vector<8x64xf32>
    %19 = arith.addf %18, %3 : vector<8x64xf32>
    %20 = math.tanh %19 : vector<8x64xf32>
    %21 = arith.mulf %20, %12 : vector<8x64xf32>
    %22 = arith.addf %21, %15 : vector<8x64xf32>
    %23 = vector.extract_strided_slice %22 {offsets = [0, 0], sizes = [8, 16], strides = [1, 1]} : vector<8x64xf32> to vector<8x16xf32>
    %24 = vector.extract_strided_slice %22 {offsets = [0, 48], sizes = [8, 16], strides = [1, 1]} : vector<8x64xf32> to vector<8x16xf32>
    %25 = arith.mulf %23, %24 : vector<8x16xf32>
    %26 = vector.extract_strided_slice %22 {offsets = [0, 32], sizes = [8, 16], strides = [1, 1]} : vector<8x64xf32> to vector<8x16xf32>
    %27 = math.tanh %25 : vector<8x16xf32>
    %28 = arith.mulf %26, %27 : vector<8x16xf32>
    %cst_11 = arith.constant 0.000000e+00 : f32
    %29 = vector.broadcast %cst_11 : f32 to vector<8x16xf32>
    %cst_12 = arith.constant 0.000000e+00 : f32
    %30 = vector.broadcast %cst_12 : f32 to vector<8x16xf32>
    %c31 = arith.constant 31 : index
    %c0_13 = arith.constant 0 : index
    %c0_14 = arith.constant 0 : index
    %31 = vector.load %arg1[%c31, %c0_13, %c0_14] : memref<32x8x128xf32, #tpu.memory_space<vmem>>, vector<1x8x128xf32>
    %32 = vector.shape_cast %31 : vector<1x8x128xf32> to vector<8x128xf32>
    %33 = vector.extract_strided_slice %32 {offsets = [0, 64], sizes = [8, 64], strides = [1, 1]} : vector<8x128xf32> to vector<8x64xf32>
    %cst_15 = arith.constant dense<0.000000e+00> : vector<8x64xf32>
    %34 = tpu.matmul %29, %0, %cst_15 {dimension_numbers = #tpu.dot_dimension_numbers<[1], [0], [0], [1], [0, 0, 1, 1], [], []>} : vector<8x16xf32>, vector<16x64xf32>, vector<8x64xf32> -> vector<8x64xf32>
    %35 = arith.addf %33, %34 : vector<8x64xf32>
    %36 = arith.addf %35, %6 : vector<8x64xf32>
    %37 = math.tanh %36 : vector<8x64xf32>
    %38 = arith.mulf %37, %12 : vector<8x64xf32>
    %39 = arith.addf %38, %15 : vector<8x64xf32>
    %40 = vector.extract_strided_slice %39 {offsets = [0, 16], sizes = [8, 16], strides = [1, 1]} : vector<8x64xf32> to vector<8x16xf32>
    %41 = arith.mulf %40, %30 : vector<8x16xf32>
    %42 = vector.extract_strided_slice %39 {offsets = [0, 0], sizes = [8, 16], strides = [1, 1]} : vector<8x64xf32> to vector<8x16xf32>
    %43 = vector.extract_strided_slice %39 {offsets = [0, 48], sizes = [8, 16], strides = [1, 1]} : vector<8x64xf32> to vector<8x16xf32>
    %44 = arith.mulf %42, %43 : vector<8x16xf32>
    %45 = arith.addf %41, %44 : vector<8x16xf32>
    %46 = vector.extract_strided_slice %39 {offsets = [0, 32], sizes = [8, 16], strides = [1, 1]} : vector<8x64xf32> to vector<8x16xf32>
    %47 = math.tanh %45 : vector<8x16xf32>
    %48 = arith.mulf %46, %47 : vector<8x16xf32>
    %c30 = arith.constant 30 : index
    %c0_16 = arith.constant 0 : index
    %c0_17 = arith.constant 0 : index
    %49 = vector.load %arg1[%c30, %c0_16, %c0_17] : memref<32x8x128xf32, #tpu.memory_space<vmem>>, vector<1x8x128xf32>
    %50 = vector.shape_cast %49 : vector<1x8x128xf32> to vector<8x128xf32>
    %51 = vector.extract_strided_slice %50 {offsets = [0, 64], sizes = [8, 64], strides = [1, 1]} : vector<8x128xf32> to vector<8x64xf32>
    %cst_18 = arith.constant dense<0.000000e+00> : vector<8x64xf32>
    %52 = tpu.matmul %48, %0, %cst_18 {dimension_numbers = #tpu.dot_dimension_numbers<[1], [0], [0], [1], [0, 0, 1, 1], [], []>} : vector<8x16xf32>, vector<16x64xf32>, vector<8x64xf32> -> vector<8x64xf32>
    %53 = arith.addf %51, %52 : vector<8x64xf32>
    %54 = arith.addf %53, %6 : vector<8x64xf32>
    %55 = math.tanh %54 : vector<8x64xf32>
    %56 = arith.mulf %55, %12 : vector<8x64xf32>
    %57 = arith.addf %56, %15 : vector<8x64xf32>
    %58 = vector.extract_strided_slice %57 {offsets = [0, 16], sizes = [8, 16], strides = [1, 1]} : vector<8x64xf32> to vector<8x16xf32>
    %59 = arith.mulf %58, %45 : vector<8x16xf32>
    %60 = vector.extract_strided_slice %57 {offsets = [0, 0], sizes = [8, 16], strides = [1, 1]} : vector<8x64xf32> to vector<8x16xf32>
    %61 = vector.extract_strided_slice %57 {offsets = [0, 48], sizes = [8, 16], strides = [1, 1]} : vector<8x64xf32> to vector<8x16xf32>
    %62 = arith.mulf %60, %61 : vector<8x16xf32>
    %63 = arith.addf %59, %62 : vector<8x16xf32>
    %64 = vector.extract_strided_slice %57 {offsets = [0, 32], sizes = [8, 16], strides = [1, 1]} : vector<8x64xf32> to vector<8x16xf32>
    %65 = math.tanh %63 : vector<8x16xf32>
    %66 = arith.mulf %64, %65 : vector<8x16xf32>
    %c29 = arith.constant 29 : index
    %c0_19 = arith.constant 0 : index
    %c0_20 = arith.constant 0 : index
    %67 = vector.load %arg1[%c29, %c0_19, %c0_20] : memref<32x8x128xf32, #tpu.memory_space<vmem>>, vector<1x8x128xf32>
    %68 = vector.shape_cast %67 : vector<1x8x128xf32> to vector<8x128xf32>
    %69 = vector.extract_strided_slice %68 {offsets = [0, 64], sizes = [8, 64], strides = [1, 1]} : vector<8x128xf32> to vector<8x64xf32>
    %cst_21 = arith.constant dense<0.000000e+00> : vector<8x64xf32>
    %70 = tpu.matmul %66, %0, %cst_21 {dimension_numbers = #tpu.dot_dimension_numbers<[1], [0], [0], [1], [0, 0, 1, 1], [], []>} : vector<8x16xf32>, vector<16x64xf32>, vector<8x64xf32> -> vector<8x64xf32>
    %71 = arith.addf %69, %70 : vector<8x64xf32>
    %72 = arith.addf %71, %6 : vector<8x64xf32>
    %73 = math.tanh %72 : vector<8x64xf32>
    %74 = arith.mulf %73, %12 : vector<8x64xf32>
    %75 = arith.addf %74, %15 : vector<8x64xf32>
    %76 = vector.extract_strided_slice %75 {offsets = [0, 16], sizes = [8, 16], strides = [1, 1]} : vector<8x64xf32> to vector<8x16xf32>
    %77 = arith.mulf %76, %63 : vector<8x16xf32>
    %78 = vector.extract_strided_slice %75 {offsets = [0, 0], sizes = [8, 16], strides = [1, 1]} : vector<8x64xf32> to vector<8x16xf32>
    %79 = vector.extract_strided_slice %75 {offsets = [0, 48], sizes = [8, 16], strides = [1, 1]} : vector<8x64xf32> to vector<8x16xf32>
    %80 = arith.mulf %78, %79 : vector<8x16xf32>
    %81 = arith.addf %77, %80 : vector<8x16xf32>
    %82 = vector.extract_strided_slice %75 {offsets = [0, 32], sizes = [8, 16], strides = [1, 1]} : vector<8x64xf32> to vector<8x16xf32>
    %83 = math.tanh %81 : vector<8x16xf32>
    %84 = arith.mulf %82, %83 : vector<8x16xf32>
    %c28 = arith.constant 28 : index
    %c0_22 = arith.constant 0 : index
    %c0_23 = arith.constant 0 : index
    %85 = vector.load %arg1[%c28, %c0_22, %c0_23] : memref<32x8x128xf32, #tpu.memory_space<vmem>>, vector<1x8x128xf32>
    %86 = vector.shape_cast %85 : vector<1x8x128xf32> to vector<8x128xf32>
    %87 = vector.extract_strided_slice %86 {offsets = [0, 64], sizes = [8, 64], strides = [1, 1]} : vector<8x128xf32> to vector<8x64xf32>
    %cst_24 = arith.constant dense<0.000000e+00> : vector<8x64xf32>
    %88 = tpu.matmul %84, %0, %cst_24 {dimension_numbers = #tpu.dot_dimension_numbers<[1], [0], [0], [1], [0, 0, 1, 1], [], []>} : vector<8x16xf32>, vector<16x64xf32>, vector<8x64xf32> -> vector<8x64xf32>
    %89 = arith.addf %87, %88 : vector<8x64xf32>
    %90 = arith.addf %89, %6 : vector<8x64xf32>
    %91 = math.tanh %90 : vector<8x64xf32>
    %92 = arith.mulf %91, %12 : vector<8x64xf32>
    %93 = arith.addf %92, %15 : vector<8x64xf32>
    %94 = vector.extract_strided_slice %93 {offsets = [0, 16], sizes = [8, 16], strides = [1, 1]} : vector<8x64xf32> to vector<8x16xf32>
    %95 = arith.mulf %94, %81 : vector<8x16xf32>
    %96 = vector.extract_strided_slice %93 {offsets = [0, 0], sizes = [8, 16], strides = [1, 1]} : vector<8x64xf32> to vector<8x16xf32>
    %97 = vector.extract_strided_slice %93 {offsets = [0, 48], sizes = [8, 16], strides = [1, 1]} : vector<8x64xf32> to vector<8x16xf32>
    %98 = arith.mulf %96, %97 : vector<8x16xf32>
    %99 = arith.addf %95, %98 : vector<8x16xf32>
    %100 = vector.extract_strided_slice %93 {offsets = [0, 32], sizes = [8, 16], strides = [1, 1]} : vector<8x64xf32> to vector<8x16xf32>
    %101 = math.tanh %99 : vector<8x16xf32>
    %102 = arith.mulf %100, %101 : vector<8x16xf32>
    %c27 = arith.constant 27 : index
    %c0_25 = arith.constant 0 : index
    %c0_26 = arith.constant 0 : index
    %103 = vector.load %arg1[%c27, %c0_25, %c0_26] : memref<32x8x128xf32, #tpu.memory_space<vmem>>, vector<1x8x128xf32>
    %104 = vector.shape_cast %103 : vector<1x8x128xf32> to vector<8x128xf32>
    %105 = vector.extract_strided_slice %104 {offsets = [0, 64], sizes = [8, 64], strides = [1, 1]} : vector<8x128xf32> to vector<8x64xf32>
    %cst_27 = arith.constant dense<0.000000e+00> : vector<8x64xf32>
    %106 = tpu.matmul %102, %0, %cst_27 {dimension_numbers = #tpu.dot_dimension_numbers<[1], [0], [0], [1], [0, 0, 1, 1], [], []>} : vector<8x16xf32>, vector<16x64xf32>, vector<8x64xf32> -> vector<8x64xf32>
    %107 = arith.addf %105, %106 : vector<8x64xf32>
    %108 = arith.addf %107, %6 : vector<8x64xf32>
    %109 = math.tanh %108 : vector<8x64xf32>
    %110 = arith.mulf %109, %12 : vector<8x64xf32>
    %111 = arith.addf %110, %15 : vector<8x64xf32>
    %112 = vector.extract_strided_slice %111 {offsets = [0, 16], sizes = [8, 16], strides = [1, 1]} : vector<8x64xf32> to vector<8x16xf32>
    %113 = arith.mulf %112, %99 : vector<8x16xf32>
    %114 = vector.extract_strided_slice %111 {offsets = [0, 0], sizes = [8, 16], strides = [1, 1]} : vector<8x64xf32> to vector<8x16xf32>
    %115 = vector.extract_strided_slice %111 {offsets = [0, 48], sizes = [8, 16], strides = [1, 1]} : vector<8x64xf32> to vector<8x16xf32>
    %116 = arith.mulf %114, %115 : vector<8x16xf32>
    %117 = arith.addf %113, %116 : vector<8x16xf32>
    %118 = vector.extract_strided_slice %111 {offsets = [0, 32], sizes = [8, 16], strides = [1, 1]} : vector<8x64xf32> to vector<8x16xf32>
    %119 = math.tanh %117 : vector<8x16xf32>
    %120 = arith.mulf %118, %119 : vector<8x16xf32>
    %c26 = arith.constant 26 : index
    %c0_28 = arith.constant 0 : index
    %c0_29 = arith.constant 0 : index
    %121 = vector.load %arg1[%c26, %c0_28, %c0_29] : memref<32x8x128xf32, #tpu.memory_space<vmem>>, vector<1x8x128xf32>
    %122 = vector.shape_cast %121 : vector<1x8x128xf32> to vector<8x128xf32>
    %123 = vector.extract_strided_slice %122 {offsets = [0, 64], sizes = [8, 64], strides = [1, 1]} : vector<8x128xf32> to vector<8x64xf32>
    %cst_30 = arith.constant dense<0.000000e+00> : vector<8x64xf32>
    %124 = tpu.matmul %120, %0, %cst_30 {dimension_numbers = #tpu.dot_dimension_numbers<[1], [0], [0], [1], [0, 0, 1, 1], [], []>} : vector<8x16xf32>, vector<16x64xf32>, vector<8x64xf32> -> vector<8x64xf32>
    %125 = arith.addf %123, %124 : vector<8x64xf32>
    %126 = arith.addf %125, %6 : vector<8x64xf32>
    %127 = math.tanh %126 : vector<8x64xf32>
    %128 = arith.mulf %127, %12 : vector<8x64xf32>
    %129 = arith.addf %128, %15 : vector<8x64xf32>
    %130 = vector.extract_strided_slice %129 {offsets = [0, 16], sizes = [8, 16], strides = [1, 1]} : vector<8x64xf32> to vector<8x16xf32>
    %131 = arith.mulf %130, %117 : vector<8x16xf32>
    %132 = vector.extract_strided_slice %129 {offsets = [0, 0], sizes = [8, 16], strides = [1, 1]} : vector<8x64xf32> to vector<8x16xf32>
    %133 = vector.extract_strided_slice %129 {offsets = [0, 48], sizes = [8, 16], strides = [1, 1]} : vector<8x64xf32> to vector<8x16xf32>
    %134 = arith.mulf %132, %133 : vector<8x16xf32>
    %135 = arith.addf %131, %134 : vector<8x16xf32>
    %136 = vector.extract_strided_slice %129 {offsets = [0, 32], sizes = [8, 16], strides = [1, 1]} : vector<8x64xf32> to vector<8x16xf32>
    %137 = math.tanh %135 : vector<8x16xf32>
    %138 = arith.mulf %136, %137 : vector<8x16xf32>
    %c25 = arith.constant 25 : index
    %c0_31 = arith.constant 0 : index
    %c0_32 = arith.constant 0 : index
    %139 = vector.load %arg1[%c25, %c0_31, %c0_32] : memref<32x8x128xf32, #tpu.memory_space<vmem>>, vector<1x8x128xf32>
    %140 = vector.shape_cast %139 : vector<1x8x128xf32> to vector<8x128xf32>
    %141 = vector.extract_strided_slice %140 {offsets = [0, 64], sizes = [8, 64], strides = [1, 1]} : vector<8x128xf32> to vector<8x64xf32>
    %cst_33 = arith.constant dense<0.000000e+00> : vector<8x64xf32>
    %142 = tpu.matmul %138, %0, %cst_33 {dimension_numbers = #tpu.dot_dimension_numbers<[1], [0], [0], [1], [0, 0, 1, 1], [], []>} : vector<8x16xf32>, vector<16x64xf32>, vector<8x64xf32> -> vector<8x64xf32>
    %143 = arith.addf %141, %142 : vector<8x64xf32>
    %144 = arith.addf %143, %6 : vector<8x64xf32>
    %145 = math.tanh %144 : vector<8x64xf32>
    %146 = arith.mulf %145, %12 : vector<8x64xf32>
    %147 = arith.addf %146, %15 : vector<8x64xf32>
    %148 = vector.extract_strided_slice %147 {offsets = [0, 16], sizes = [8, 16], strides = [1, 1]} : vector<8x64xf32> to vector<8x16xf32>
    %149 = arith.mulf %148, %135 : vector<8x16xf32>
    %150 = vector.extract_strided_slice %147 {offsets = [0, 0], sizes = [8, 16], strides = [1, 1]} : vector<8x64xf32> to vector<8x16xf32>
    %151 = vector.extract_strided_slice %147 {offsets = [0, 48], sizes = [8, 16], strides = [1, 1]} : vector<8x64xf32> to vector<8x16xf32>
    %152 = arith.mulf %150, %151 : vector<8x16xf32>
    %153 = arith.addf %149, %152 : vector<8x16xf32>
    %154 = vector.extract_strided_slice %147 {offsets = [0, 32], sizes = [8, 16], strides = [1, 1]} : vector<8x64xf32> to vector<8x16xf32>
    %155 = math.tanh %153 : vector<8x16xf32>
    %156 = arith.mulf %154, %155 : vector<8x16xf32>
    %c24 = arith.constant 24 : index
    %c0_34 = arith.constant 0 : index
    %c0_35 = arith.constant 0 : index
    %157 = vector.load %arg1[%c24, %c0_34, %c0_35] : memref<32x8x128xf32, #tpu.memory_space<vmem>>, vector<1x8x128xf32>
    %158 = vector.shape_cast %157 : vector<1x8x128xf32> to vector<8x128xf32>
    %159 = vector.extract_strided_slice %158 {offsets = [0, 64], sizes = [8, 64], strides = [1, 1]} : vector<8x128xf32> to vector<8x64xf32>
    %cst_36 = arith.constant dense<0.000000e+00> : vector<8x64xf32>
    %160 = tpu.matmul %156, %0, %cst_36 {dimension_numbers = #tpu.dot_dimension_numbers<[1], [0], [0], [1], [0, 0, 1, 1], [], []>} : vector<8x16xf32>, vector<16x64xf32>, vector<8x64xf32> -> vector<8x64xf32>
    %161 = arith.addf %159, %160 : vector<8x64xf32>
    %162 = arith.addf %161, %6 : vector<8x64xf32>
    %163 = math.tanh %162 : vector<8x64xf32>
    %164 = arith.mulf %163, %12 : vector<8x64xf32>
    %165 = arith.addf %164, %15 : vector<8x64xf32>
    %166 = vector.extract_strided_slice %165 {offsets = [0, 16], sizes = [8, 16], strides = [1, 1]} : vector<8x64xf32> to vector<8x16xf32>
    %167 = arith.mulf %166, %153 : vector<8x16xf32>
    %168 = vector.extract_strided_slice %165 {offsets = [0, 0], sizes = [8, 16], strides = [1, 1]} : vector<8x64xf32> to vector<8x16xf32>
    %169 = vector.extract_strided_slice %165 {offsets = [0, 48], sizes = [8, 16], strides = [1, 1]} : vector<8x64xf32> to vector<8x16xf32>
    %170 = arith.mulf %168, %169 : vector<8x16xf32>
    %171 = arith.addf %167, %170 : vector<8x16xf32>
    %172 = vector.extract_strided_slice %165 {offsets = [0, 32], sizes = [8, 16], strides = [1, 1]} : vector<8x64xf32> to vector<8x16xf32>
    %173 = math.tanh %171 : vector<8x16xf32>
    %174 = arith.mulf %172, %173 : vector<8x16xf32>
    %c23 = arith.constant 23 : index
    %c0_37 = arith.constant 0 : index
    %c0_38 = arith.constant 0 : index
    %175 = vector.load %arg1[%c23, %c0_37, %c0_38] : memref<32x8x128xf32, #tpu.memory_space<vmem>>, vector<1x8x128xf32>
    %176 = vector.shape_cast %175 : vector<1x8x128xf32> to vector<8x128xf32>
    %177 = vector.extract_strided_slice %176 {offsets = [0, 64], sizes = [8, 64], strides = [1, 1]} : vector<8x128xf32> to vector<8x64xf32>
    %cst_39 = arith.constant dense<0.000000e+00> : vector<8x64xf32>
    %178 = tpu.matmul %174, %0, %cst_39 {dimension_numbers = #tpu.dot_dimension_numbers<[1], [0], [0], [1], [0, 0, 1, 1], [], []>} : vector<8x16xf32>, vector<16x64xf32>, vector<8x64xf32> -> vector<8x64xf32>
    %179 = arith.addf %177, %178 : vector<8x64xf32>
    %180 = arith.addf %179, %6 : vector<8x64xf32>
    %181 = math.tanh %180 : vector<8x64xf32>
    %182 = arith.mulf %181, %12 : vector<8x64xf32>
    %183 = arith.addf %182, %15 : vector<8x64xf32>
    %184 = vector.extract_strided_slice %183 {offsets = [0, 16], sizes = [8, 16], strides = [1, 1]} : vector<8x64xf32> to vector<8x16xf32>
    %185 = arith.mulf %184, %171 : vector<8x16xf32>
    %186 = vector.extract_strided_slice %183 {offsets = [0, 0], sizes = [8, 16], strides = [1, 1]} : vector<8x64xf32> to vector<8x16xf32>
    %187 = vector.extract_strided_slice %183 {offsets = [0, 48], sizes = [8, 16], strides = [1, 1]} : vector<8x64xf32> to vector<8x16xf32>
    %188 = arith.mulf %186, %187 : vector<8x16xf32>
    %189 = arith.addf %185, %188 : vector<8x16xf32>
    %190 = vector.extract_strided_slice %183 {offsets = [0, 32], sizes = [8, 16], strides = [1, 1]} : vector<8x64xf32> to vector<8x16xf32>
    %191 = math.tanh %189 : vector<8x16xf32>
    %192 = arith.mulf %190, %191 : vector<8x16xf32>
    %c22 = arith.constant 22 : index
    %c0_40 = arith.constant 0 : index
    %c0_41 = arith.constant 0 : index
    %193 = vector.load %arg1[%c22, %c0_40, %c0_41] : memref<32x8x128xf32, #tpu.memory_space<vmem>>, vector<1x8x128xf32>
    %194 = vector.shape_cast %193 : vector<1x8x128xf32> to vector<8x128xf32>
    %195 = vector.extract_strided_slice %194 {offsets = [0, 64], sizes = [8, 64], strides = [1, 1]} : vector<8x128xf32> to vector<8x64xf32>
    %cst_42 = arith.constant dense<0.000000e+00> : vector<8x64xf32>
    %196 = tpu.matmul %192, %0, %cst_42 {dimension_numbers = #tpu.dot_dimension_numbers<[1], [0], [0], [1], [0, 0, 1, 1], [], []>} : vector<8x16xf32>, vector<16x64xf32>, vector<8x64xf32> -> vector<8x64xf32>
    %197 = arith.addf %195, %196 : vector<8x64xf32>
    %198 = arith.addf %197, %6 : vector<8x64xf32>
    %199 = math.tanh %198 : vector<8x64xf32>
    %200 = arith.mulf %199, %12 : vector<8x64xf32>
    %201 = arith.addf %200, %15 : vector<8x64xf32>
    %202 = vector.extract_strided_slice %201 {offsets = [0, 16], sizes = [8, 16], strides = [1, 1]} : vector<8x64xf32> to vector<8x16xf32>
    %203 = arith.mulf %202, %189 : vector<8x16xf32>
    %204 = vector.extract_strided_slice %201 {offsets = [0, 0], sizes = [8, 16], strides = [1, 1]} : vector<8x64xf32> to vector<8x16xf32>
    %205 = vector.extract_strided_slice %201 {offsets = [0, 48], sizes = [8, 16], strides = [1, 1]} : vector<8x64xf32> to vector<8x16xf32>
    %206 = arith.mulf %204, %205 : vector<8x16xf32>
    %207 = arith.addf %203, %206 : vector<8x16xf32>
    %208 = vector.extract_strided_slice %201 {offsets = [0, 32], sizes = [8, 16], strides = [1, 1]} : vector<8x64xf32> to vector<8x16xf32>
    %209 = math.tanh %207 : vector<8x16xf32>
    %210 = arith.mulf %208, %209 : vector<8x16xf32>
    %c21 = arith.constant 21 : index
    %c0_43 = arith.constant 0 : index
    %c0_44 = arith.constant 0 : index
    %211 = vector.load %arg1[%c21, %c0_43, %c0_44] : memref<32x8x128xf32, #tpu.memory_space<vmem>>, vector<1x8x128xf32>
    %212 = vector.shape_cast %211 : vector<1x8x128xf32> to vector<8x128xf32>
    %213 = vector.extract_strided_slice %212 {offsets = [0, 64], sizes = [8, 64], strides = [1, 1]} : vector<8x128xf32> to vector<8x64xf32>
    %cst_45 = arith.constant dense<0.000000e+00> : vector<8x64xf32>
    %214 = tpu.matmul %210, %0, %cst_45 {dimension_numbers = #tpu.dot_dimension_numbers<[1], [0], [0], [1], [0, 0, 1, 1], [], []>} : vector<8x16xf32>, vector<16x64xf32>, vector<8x64xf32> -> vector<8x64xf32>
    %215 = arith.addf %213, %214 : vector<8x64xf32>
    %216 = arith.addf %215, %6 : vector<8x64xf32>
    %217 = math.tanh %216 : vector<8x64xf32>
    %218 = arith.mulf %217, %12 : vector<8x64xf32>
    %219 = arith.addf %218, %15 : vector<8x64xf32>
    %220 = vector.extract_strided_slice %219 {offsets = [0, 16], sizes = [8, 16], strides = [1, 1]} : vector<8x64xf32> to vector<8x16xf32>
    %221 = arith.mulf %220, %207 : vector<8x16xf32>
    %222 = vector.extract_strided_slice %219 {offsets = [0, 0], sizes = [8, 16], strides = [1, 1]} : vector<8x64xf32> to vector<8x16xf32>
    %223 = vector.extract_strided_slice %219 {offsets = [0, 48], sizes = [8, 16], strides = [1, 1]} : vector<8x64xf32> to vector<8x16xf32>
    %224 = arith.mulf %222, %223 : vector<8x16xf32>
    %225 = arith.addf %221, %224 : vector<8x16xf32>
    %226 = vector.extract_strided_slice %219 {offsets = [0, 32], sizes = [8, 16], strides = [1, 1]} : vector<8x64xf32> to vector<8x16xf32>
    %227 = math.tanh %225 : vector<8x16xf32>
    %228 = arith.mulf %226, %227 : vector<8x16xf32>
    %c20 = arith.constant 20 : index
    %c0_46 = arith.constant 0 : index
    %c0_47 = arith.constant 0 : index
    %229 = vector.load %arg1[%c20, %c0_46, %c0_47] : memref<32x8x128xf32, #tpu.memory_space<vmem>>, vector<1x8x128xf32>
    %230 = vector.shape_cast %229 : vector<1x8x128xf32> to vector<8x128xf32>
    %231 = vector.extract_strided_slice %230 {offsets = [0, 64], sizes = [8, 64], strides = [1, 1]} : vector<8x128xf32> to vector<8x64xf32>
    %cst_48 = arith.constant dense<0.000000e+00> : vector<8x64xf32>
    %232 = tpu.matmul %228, %0, %cst_48 {dimension_numbers = #tpu.dot_dimension_numbers<[1], [0], [0], [1], [0, 0, 1, 1], [], []>} : vector<8x16xf32>, vector<16x64xf32>, vector<8x64xf32> -> vector<8x64xf32>
    %233 = arith.addf %231, %232 : vector<8x64xf32>
    %234 = arith.addf %233, %6 : vector<8x64xf32>
    %235 = math.tanh %234 : vector<8x64xf32>
    %236 = arith.mulf %235, %12 : vector<8x64xf32>
    %237 = arith.addf %236, %15 : vector<8x64xf32>
    %238 = vector.extract_strided_slice %237 {offsets = [0, 16], sizes = [8, 16], strides = [1, 1]} : vector<8x64xf32> to vector<8x16xf32>
    %239 = arith.mulf %238, %225 : vector<8x16xf32>
    %240 = vector.extract_strided_slice %237 {offsets = [0, 0], sizes = [8, 16], strides = [1, 1]} : vector<8x64xf32> to vector<8x16xf32>
    %241 = vector.extract_strided_slice %237 {offsets = [0, 48], sizes = [8, 16], strides = [1, 1]} : vector<8x64xf32> to vector<8x16xf32>
    %242 = arith.mulf %240, %241 : vector<8x16xf32>
    %243 = arith.addf %239, %242 : vector<8x16xf32>
    %244 = vector.extract_strided_slice %237 {offsets = [0, 32], sizes = [8, 16], strides = [1, 1]} : vector<8x64xf32> to vector<8x16xf32>
    %245 = math.tanh %243 : vector<8x16xf32>
    %246 = arith.mulf %244, %245 : vector<8x16xf32>
    %c19 = arith.constant 19 : index
    %c0_49 = arith.constant 0 : index
    %c0_50 = arith.constant 0 : index
    %247 = vector.load %arg1[%c19, %c0_49, %c0_50] : memref<32x8x128xf32, #tpu.memory_space<vmem>>, vector<1x8x128xf32>
    %248 = vector.shape_cast %247 : vector<1x8x128xf32> to vector<8x128xf32>
    %249 = vector.extract_strided_slice %248 {offsets = [0, 64], sizes = [8, 64], strides = [1, 1]} : vector<8x128xf32> to vector<8x64xf32>
    %cst_51 = arith.constant dense<0.000000e+00> : vector<8x64xf32>
    %250 = tpu.matmul %246, %0, %cst_51 {dimension_numbers = #tpu.dot_dimension_numbers<[1], [0], [0], [1], [0, 0, 1, 1], [], []>} : vector<8x16xf32>, vector<16x64xf32>, vector<8x64xf32> -> vector<8x64xf32>
    %251 = arith.addf %249, %250 : vector<8x64xf32>
    %252 = arith.addf %251, %6 : vector<8x64xf32>
    %253 = math.tanh %252 : vector<8x64xf32>
    %254 = arith.mulf %253, %12 : vector<8x64xf32>
    %255 = arith.addf %254, %15 : vector<8x64xf32>
    %256 = vector.extract_strided_slice %255 {offsets = [0, 16], sizes = [8, 16], strides = [1, 1]} : vector<8x64xf32> to vector<8x16xf32>
    %257 = arith.mulf %256, %243 : vector<8x16xf32>
    %258 = vector.extract_strided_slice %255 {offsets = [0, 0], sizes = [8, 16], strides = [1, 1]} : vector<8x64xf32> to vector<8x16xf32>
    %259 = vector.extract_strided_slice %255 {offsets = [0, 48], sizes = [8, 16], strides = [1, 1]} : vector<8x64xf32> to vector<8x16xf32>
    %260 = arith.mulf %258, %259 : vector<8x16xf32>
    %261 = arith.addf %257, %260 : vector<8x16xf32>
    %262 = vector.extract_strided_slice %255 {offsets = [0, 32], sizes = [8, 16], strides = [1, 1]} : vector<8x64xf32> to vector<8x16xf32>
    %263 = math.tanh %261 : vector<8x16xf32>
    %264 = arith.mulf %262, %263 : vector<8x16xf32>
    %c18 = arith.constant 18 : index
    %c0_52 = arith.constant 0 : index
    %c0_53 = arith.constant 0 : index
    %265 = vector.load %arg1[%c18, %c0_52, %c0_53] : memref<32x8x128xf32, #tpu.memory_space<vmem>>, vector<1x8x128xf32>
    %266 = vector.shape_cast %265 : vector<1x8x128xf32> to vector<8x128xf32>
    %267 = vector.extract_strided_slice %266 {offsets = [0, 64], sizes = [8, 64], strides = [1, 1]} : vector<8x128xf32> to vector<8x64xf32>
    %cst_54 = arith.constant dense<0.000000e+00> : vector<8x64xf32>
    %268 = tpu.matmul %264, %0, %cst_54 {dimension_numbers = #tpu.dot_dimension_numbers<[1], [0], [0], [1], [0, 0, 1, 1], [], []>} : vector<8x16xf32>, vector<16x64xf32>, vector<8x64xf32> -> vector<8x64xf32>
    %269 = arith.addf %267, %268 : vector<8x64xf32>
    %270 = arith.addf %269, %6 : vector<8x64xf32>
    %271 = math.tanh %270 : vector<8x64xf32>
    %272 = arith.mulf %271, %12 : vector<8x64xf32>
    %273 = arith.addf %272, %15 : vector<8x64xf32>
    %274 = vector.extract_strided_slice %273 {offsets = [0, 16], sizes = [8, 16], strides = [1, 1]} : vector<8x64xf32> to vector<8x16xf32>
    %275 = arith.mulf %274, %261 : vector<8x16xf32>
    %276 = vector.extract_strided_slice %273 {offsets = [0, 0], sizes = [8, 16], strides = [1, 1]} : vector<8x64xf32> to vector<8x16xf32>
    %277 = vector.extract_strided_slice %273 {offsets = [0, 48], sizes = [8, 16], strides = [1, 1]} : vector<8x64xf32> to vector<8x16xf32>
    %278 = arith.mulf %276, %277 : vector<8x16xf32>
    %279 = arith.addf %275, %278 : vector<8x16xf32>
    %280 = vector.extract_strided_slice %273 {offsets = [0, 32], sizes = [8, 16], strides = [1, 1]} : vector<8x64xf32> to vector<8x16xf32>
    %281 = math.tanh %279 : vector<8x16xf32>
    %282 = arith.mulf %280, %281 : vector<8x16xf32>
    %c17 = arith.constant 17 : index
    %c0_55 = arith.constant 0 : index
    %c0_56 = arith.constant 0 : index
    %283 = vector.load %arg1[%c17, %c0_55, %c0_56] : memref<32x8x128xf32, #tpu.memory_space<vmem>>, vector<1x8x128xf32>
    %284 = vector.shape_cast %283 : vector<1x8x128xf32> to vector<8x128xf32>
    %285 = vector.extract_strided_slice %284 {offsets = [0, 64], sizes = [8, 64], strides = [1, 1]} : vector<8x128xf32> to vector<8x64xf32>
    %cst_57 = arith.constant dense<0.000000e+00> : vector<8x64xf32>
    %286 = tpu.matmul %282, %0, %cst_57 {dimension_numbers = #tpu.dot_dimension_numbers<[1], [0], [0], [1], [0, 0, 1, 1], [], []>} : vector<8x16xf32>, vector<16x64xf32>, vector<8x64xf32> -> vector<8x64xf32>
    %287 = arith.addf %285, %286 : vector<8x64xf32>
    %288 = arith.addf %287, %6 : vector<8x64xf32>
    %289 = math.tanh %288 : vector<8x64xf32>
    %290 = arith.mulf %289, %12 : vector<8x64xf32>
    %291 = arith.addf %290, %15 : vector<8x64xf32>
    %292 = vector.extract_strided_slice %291 {offsets = [0, 16], sizes = [8, 16], strides = [1, 1]} : vector<8x64xf32> to vector<8x16xf32>
    %293 = arith.mulf %292, %279 : vector<8x16xf32>
    %294 = vector.extract_strided_slice %291 {offsets = [0, 0], sizes = [8, 16], strides = [1, 1]} : vector<8x64xf32> to vector<8x16xf32>
    %295 = vector.extract_strided_slice %291 {offsets = [0, 48], sizes = [8, 16], strides = [1, 1]} : vector<8x64xf32> to vector<8x16xf32>
    %296 = arith.mulf %294, %295 : vector<8x16xf32>
    %297 = arith.addf %293, %296 : vector<8x16xf32>
    %298 = vector.extract_strided_slice %291 {offsets = [0, 32], sizes = [8, 16], strides = [1, 1]} : vector<8x64xf32> to vector<8x16xf32>
    %299 = math.tanh %297 : vector<8x16xf32>
    %300 = arith.mulf %298, %299 : vector<8x16xf32>
    %c16 = arith.constant 16 : index
    %c0_58 = arith.constant 0 : index
    %c0_59 = arith.constant 0 : index
    %301 = vector.load %arg1[%c16, %c0_58, %c0_59] : memref<32x8x128xf32, #tpu.memory_space<vmem>>, vector<1x8x128xf32>
    %302 = vector.shape_cast %301 : vector<1x8x128xf32> to vector<8x128xf32>
    %303 = vector.extract_strided_slice %302 {offsets = [0, 64], sizes = [8, 64], strides = [1, 1]} : vector<8x128xf32> to vector<8x64xf32>
    %cst_60 = arith.constant dense<0.000000e+00> : vector<8x64xf32>
    %304 = tpu.matmul %300, %0, %cst_60 {dimension_numbers = #tpu.dot_dimension_numbers<[1], [0], [0], [1], [0, 0, 1, 1], [], []>} : vector<8x16xf32>, vector<16x64xf32>, vector<8x64xf32> -> vector<8x64xf32>
    %305 = arith.addf %303, %304 : vector<8x64xf32>
    %306 = arith.addf %305, %6 : vector<8x64xf32>
    %307 = math.tanh %306 : vector<8x64xf32>
    %308 = arith.mulf %307, %12 : vector<8x64xf32>
    %309 = arith.addf %308, %15 : vector<8x64xf32>
    %310 = vector.extract_strided_slice %309 {offsets = [0, 16], sizes = [8, 16], strides = [1, 1]} : vector<8x64xf32> to vector<8x16xf32>
    %311 = arith.mulf %310, %297 : vector<8x16xf32>
    %312 = vector.extract_strided_slice %309 {offsets = [0, 0], sizes = [8, 16], strides = [1, 1]} : vector<8x64xf32> to vector<8x16xf32>
    %313 = vector.extract_strided_slice %309 {offsets = [0, 48], sizes = [8, 16], strides = [1, 1]} : vector<8x64xf32> to vector<8x16xf32>
    %314 = arith.mulf %312, %313 : vector<8x16xf32>
    %315 = arith.addf %311, %314 : vector<8x16xf32>
    %316 = vector.extract_strided_slice %309 {offsets = [0, 32], sizes = [8, 16], strides = [1, 1]} : vector<8x64xf32> to vector<8x16xf32>
    %317 = math.tanh %315 : vector<8x16xf32>
    %318 = arith.mulf %316, %317 : vector<8x16xf32>
    %c15 = arith.constant 15 : index
    %c0_61 = arith.constant 0 : index
    %c0_62 = arith.constant 0 : index
    %319 = vector.load %arg1[%c15, %c0_61, %c0_62] : memref<32x8x128xf32, #tpu.memory_space<vmem>>, vector<1x8x128xf32>
    %320 = vector.shape_cast %319 : vector<1x8x128xf32> to vector<8x128xf32>
    %321 = vector.extract_strided_slice %320 {offsets = [0, 64], sizes = [8, 64], strides = [1, 1]} : vector<8x128xf32> to vector<8x64xf32>
    %cst_63 = arith.constant dense<0.000000e+00> : vector<8x64xf32>
    %322 = tpu.matmul %318, %0, %cst_63 {dimension_numbers = #tpu.dot_dimension_numbers<[1], [0], [0], [1], [0, 0, 1, 1], [], []>} : vector<8x16xf32>, vector<16x64xf32>, vector<8x64xf32> -> vector<8x64xf32>
    %323 = arith.addf %321, %322 : vector<8x64xf32>
    %324 = arith.addf %323, %6 : vector<8x64xf32>
    %325 = math.tanh %324 : vector<8x64xf32>
    %326 = arith.mulf %325, %12 : vector<8x64xf32>
    %327 = arith.addf %326, %15 : vector<8x64xf32>
    %328 = vector.extract_strided_slice %327 {offsets = [0, 16], sizes = [8, 16], strides = [1, 1]} : vector<8x64xf32> to vector<8x16xf32>
    %329 = arith.mulf %328, %315 : vector<8x16xf32>
    %330 = vector.extract_strided_slice %327 {offsets = [0, 0], sizes = [8, 16], strides = [1, 1]} : vector<8x64xf32> to vector<8x16xf32>
    %331 = vector.extract_strided_slice %327 {offsets = [0, 48], sizes = [8, 16], strides = [1, 1]} : vector<8x64xf32> to vector<8x16xf32>
    %332 = arith.mulf %330, %331 : vector<8x16xf32>
    %333 = arith.addf %329, %332 : vector<8x16xf32>
    %334 = vector.extract_strided_slice %327 {offsets = [0, 32], sizes = [8, 16], strides = [1, 1]} : vector<8x64xf32> to vector<8x16xf32>
    %335 = math.tanh %333 : vector<8x16xf32>
    %336 = arith.mulf %334, %335 : vector<8x16xf32>
    %c14 = arith.constant 14 : index
    %c0_64 = arith.constant 0 : index
    %c0_65 = arith.constant 0 : index
    %337 = vector.load %arg1[%c14, %c0_64, %c0_65] : memref<32x8x128xf32, #tpu.memory_space<vmem>>, vector<1x8x128xf32>
    %338 = vector.shape_cast %337 : vector<1x8x128xf32> to vector<8x128xf32>
    %339 = vector.extract_strided_slice %338 {offsets = [0, 64], sizes = [8, 64], strides = [1, 1]} : vector<8x128xf32> to vector<8x64xf32>
    %cst_66 = arith.constant dense<0.000000e+00> : vector<8x64xf32>
    %340 = tpu.matmul %336, %0, %cst_66 {dimension_numbers = #tpu.dot_dimension_numbers<[1], [0], [0], [1], [0, 0, 1, 1], [], []>} : vector<8x16xf32>, vector<16x64xf32>, vector<8x64xf32> -> vector<8x64xf32>
    %341 = arith.addf %339, %340 : vector<8x64xf32>
    %342 = arith.addf %341, %6 : vector<8x64xf32>
    %343 = math.tanh %342 : vector<8x64xf32>
    %344 = arith.mulf %343, %12 : vector<8x64xf32>
    %345 = arith.addf %344, %15 : vector<8x64xf32>
    %346 = vector.extract_strided_slice %345 {offsets = [0, 16], sizes = [8, 16], strides = [1, 1]} : vector<8x64xf32> to vector<8x16xf32>
    %347 = arith.mulf %346, %333 : vector<8x16xf32>
    %348 = vector.extract_strided_slice %345 {offsets = [0, 0], sizes = [8, 16], strides = [1, 1]} : vector<8x64xf32> to vector<8x16xf32>
    %349 = vector.extract_strided_slice %345 {offsets = [0, 48], sizes = [8, 16], strides = [1, 1]} : vector<8x64xf32> to vector<8x16xf32>
    %350 = arith.mulf %348, %349 : vector<8x16xf32>
    %351 = arith.addf %347, %350 : vector<8x16xf32>
    %352 = vector.extract_strided_slice %345 {offsets = [0, 32], sizes = [8, 16], strides = [1, 1]} : vector<8x64xf32> to vector<8x16xf32>
    %353 = math.tanh %351 : vector<8x16xf32>
    %354 = arith.mulf %352, %353 : vector<8x16xf32>
    %c13 = arith.constant 13 : index
    %c0_67 = arith.constant 0 : index
    %c0_68 = arith.constant 0 : index
    %355 = vector.load %arg1[%c13, %c0_67, %c0_68] : memref<32x8x128xf32, #tpu.memory_space<vmem>>, vector<1x8x128xf32>
    %356 = vector.shape_cast %355 : vector<1x8x128xf32> to vector<8x128xf32>
    %357 = vector.extract_strided_slice %356 {offsets = [0, 64], sizes = [8, 64], strides = [1, 1]} : vector<8x128xf32> to vector<8x64xf32>
    %cst_69 = arith.constant dense<0.000000e+00> : vector<8x64xf32>
    %358 = tpu.matmul %354, %0, %cst_69 {dimension_numbers = #tpu.dot_dimension_numbers<[1], [0], [0], [1], [0, 0, 1, 1], [], []>} : vector<8x16xf32>, vector<16x64xf32>, vector<8x64xf32> -> vector<8x64xf32>
    %359 = arith.addf %357, %358 : vector<8x64xf32>
    %360 = arith.addf %359, %6 : vector<8x64xf32>
    %361 = math.tanh %360 : vector<8x64xf32>
    %362 = arith.mulf %361, %12 : vector<8x64xf32>
    %363 = arith.addf %362, %15 : vector<8x64xf32>
    %364 = vector.extract_strided_slice %363 {offsets = [0, 16], sizes = [8, 16], strides = [1, 1]} : vector<8x64xf32> to vector<8x16xf32>
    %365 = arith.mulf %364, %351 : vector<8x16xf32>
    %366 = vector.extract_strided_slice %363 {offsets = [0, 0], sizes = [8, 16], strides = [1, 1]} : vector<8x64xf32> to vector<8x16xf32>
    %367 = vector.extract_strided_slice %363 {offsets = [0, 48], sizes = [8, 16], strides = [1, 1]} : vector<8x64xf32> to vector<8x16xf32>
    %368 = arith.mulf %366, %367 : vector<8x16xf32>
    %369 = arith.addf %365, %368 : vector<8x16xf32>
    %370 = vector.extract_strided_slice %363 {offsets = [0, 32], sizes = [8, 16], strides = [1, 1]} : vector<8x64xf32> to vector<8x16xf32>
    %371 = math.tanh %369 : vector<8x16xf32>
    %372 = arith.mulf %370, %371 : vector<8x16xf32>
    %c12 = arith.constant 12 : index
    %c0_70 = arith.constant 0 : index
    %c0_71 = arith.constant 0 : index
    %373 = vector.load %arg1[%c12, %c0_70, %c0_71] : memref<32x8x128xf32, #tpu.memory_space<vmem>>, vector<1x8x128xf32>
    %374 = vector.shape_cast %373 : vector<1x8x128xf32> to vector<8x128xf32>
    %375 = vector.extract_strided_slice %374 {offsets = [0, 64], sizes = [8, 64], strides = [1, 1]} : vector<8x128xf32> to vector<8x64xf32>
    %cst_72 = arith.constant dense<0.000000e+00> : vector<8x64xf32>
    %376 = tpu.matmul %372, %0, %cst_72 {dimension_numbers = #tpu.dot_dimension_numbers<[1], [0], [0], [1], [0, 0, 1, 1], [], []>} : vector<8x16xf32>, vector<16x64xf32>, vector<8x64xf32> -> vector<8x64xf32>
    %377 = arith.addf %375, %376 : vector<8x64xf32>
    %378 = arith.addf %377, %6 : vector<8x64xf32>
    %379 = math.tanh %378 : vector<8x64xf32>
    %380 = arith.mulf %379, %12 : vector<8x64xf32>
    %381 = arith.addf %380, %15 : vector<8x64xf32>
    %382 = vector.extract_strided_slice %381 {offsets = [0, 16], sizes = [8, 16], strides = [1, 1]} : vector<8x64xf32> to vector<8x16xf32>
    %383 = arith.mulf %382, %369 : vector<8x16xf32>
    %384 = vector.extract_strided_slice %381 {offsets = [0, 0], sizes = [8, 16], strides = [1, 1]} : vector<8x64xf32> to vector<8x16xf32>
    %385 = vector.extract_strided_slice %381 {offsets = [0, 48], sizes = [8, 16], strides = [1, 1]} : vector<8x64xf32> to vector<8x16xf32>
    %386 = arith.mulf %384, %385 : vector<8x16xf32>
    %387 = arith.addf %383, %386 : vector<8x16xf32>
    %388 = vector.extract_strided_slice %381 {offsets = [0, 32], sizes = [8, 16], strides = [1, 1]} : vector<8x64xf32> to vector<8x16xf32>
    %389 = math.tanh %387 : vector<8x16xf32>
    %390 = arith.mulf %388, %389 : vector<8x16xf32>
    %c11 = arith.constant 11 : index
    %c0_73 = arith.constant 0 : index
    %c0_74 = arith.constant 0 : index
    %391 = vector.load %arg1[%c11, %c0_73, %c0_74] : memref<32x8x128xf32, #tpu.memory_space<vmem>>, vector<1x8x128xf32>
    %392 = vector.shape_cast %391 : vector<1x8x128xf32> to vector<8x128xf32>
    %393 = vector.extract_strided_slice %392 {offsets = [0, 64], sizes = [8, 64], strides = [1, 1]} : vector<8x128xf32> to vector<8x64xf32>
    %cst_75 = arith.constant dense<0.000000e+00> : vector<8x64xf32>
    %394 = tpu.matmul %390, %0, %cst_75 {dimension_numbers = #tpu.dot_dimension_numbers<[1], [0], [0], [1], [0, 0, 1, 1], [], []>} : vector<8x16xf32>, vector<16x64xf32>, vector<8x64xf32> -> vector<8x64xf32>
    %395 = arith.addf %393, %394 : vector<8x64xf32>
    %396 = arith.addf %395, %6 : vector<8x64xf32>
    %397 = math.tanh %396 : vector<8x64xf32>
    %398 = arith.mulf %397, %12 : vector<8x64xf32>
    %399 = arith.addf %398, %15 : vector<8x64xf32>
    %400 = vector.extract_strided_slice %399 {offsets = [0, 16], sizes = [8, 16], strides = [1, 1]} : vector<8x64xf32> to vector<8x16xf32>
    %401 = arith.mulf %400, %387 : vector<8x16xf32>
    %402 = vector.extract_strided_slice %399 {offsets = [0, 0], sizes = [8, 16], strides = [1, 1]} : vector<8x64xf32> to vector<8x16xf32>
    %403 = vector.extract_strided_slice %399 {offsets = [0, 48], sizes = [8, 16], strides = [1, 1]} : vector<8x64xf32> to vector<8x16xf32>
    %404 = arith.mulf %402, %403 : vector<8x16xf32>
    %405 = arith.addf %401, %404 : vector<8x16xf32>
    %406 = vector.extract_strided_slice %399 {offsets = [0, 32], sizes = [8, 16], strides = [1, 1]} : vector<8x64xf32> to vector<8x16xf32>
    %407 = math.tanh %405 : vector<8x16xf32>
    %408 = arith.mulf %406, %407 : vector<8x16xf32>
    %c10 = arith.constant 10 : index
    %c0_76 = arith.constant 0 : index
    %c0_77 = arith.constant 0 : index
    %409 = vector.load %arg1[%c10, %c0_76, %c0_77] : memref<32x8x128xf32, #tpu.memory_space<vmem>>, vector<1x8x128xf32>
    %410 = vector.shape_cast %409 : vector<1x8x128xf32> to vector<8x128xf32>
    %411 = vector.extract_strided_slice %410 {offsets = [0, 64], sizes = [8, 64], strides = [1, 1]} : vector<8x128xf32> to vector<8x64xf32>
    %cst_78 = arith.constant dense<0.000000e+00> : vector<8x64xf32>
    %412 = tpu.matmul %408, %0, %cst_78 {dimension_numbers = #tpu.dot_dimension_numbers<[1], [0], [0], [1], [0, 0, 1, 1], [], []>} : vector<8x16xf32>, vector<16x64xf32>, vector<8x64xf32> -> vector<8x64xf32>
    %413 = arith.addf %411, %412 : vector<8x64xf32>
    %414 = arith.addf %413, %6 : vector<8x64xf32>
    %415 = math.tanh %414 : vector<8x64xf32>
    %416 = arith.mulf %415, %12 : vector<8x64xf32>
    %417 = arith.addf %416, %15 : vector<8x64xf32>
    %418 = vector.extract_strided_slice %417 {offsets = [0, 16], sizes = [8, 16], strides = [1, 1]} : vector<8x64xf32> to vector<8x16xf32>
    %419 = arith.mulf %418, %405 : vector<8x16xf32>
    %420 = vector.extract_strided_slice %417 {offsets = [0, 0], sizes = [8, 16], strides = [1, 1]} : vector<8x64xf32> to vector<8x16xf32>
    %421 = vector.extract_strided_slice %417 {offsets = [0, 48], sizes = [8, 16], strides = [1, 1]} : vector<8x64xf32> to vector<8x16xf32>
    %422 = arith.mulf %420, %421 : vector<8x16xf32>
    %423 = arith.addf %419, %422 : vector<8x16xf32>
    %424 = vector.extract_strided_slice %417 {offsets = [0, 32], sizes = [8, 16], strides = [1, 1]} : vector<8x64xf32> to vector<8x16xf32>
    %425 = math.tanh %423 : vector<8x16xf32>
    %426 = arith.mulf %424, %425 : vector<8x16xf32>
    %c9 = arith.constant 9 : index
    %c0_79 = arith.constant 0 : index
    %c0_80 = arith.constant 0 : index
    %427 = vector.load %arg1[%c9, %c0_79, %c0_80] : memref<32x8x128xf32, #tpu.memory_space<vmem>>, vector<1x8x128xf32>
    %428 = vector.shape_cast %427 : vector<1x8x128xf32> to vector<8x128xf32>
    %429 = vector.extract_strided_slice %428 {offsets = [0, 64], sizes = [8, 64], strides = [1, 1]} : vector<8x128xf32> to vector<8x64xf32>
    %cst_81 = arith.constant dense<0.000000e+00> : vector<8x64xf32>
    %430 = tpu.matmul %426, %0, %cst_81 {dimension_numbers = #tpu.dot_dimension_numbers<[1], [0], [0], [1], [0, 0, 1, 1], [], []>} : vector<8x16xf32>, vector<16x64xf32>, vector<8x64xf32> -> vector<8x64xf32>
    %431 = arith.addf %429, %430 : vector<8x64xf32>
    %432 = arith.addf %431, %6 : vector<8x64xf32>
    %433 = math.tanh %432 : vector<8x64xf32>
    %434 = arith.mulf %433, %12 : vector<8x64xf32>
    %435 = arith.addf %434, %15 : vector<8x64xf32>
    %436 = vector.extract_strided_slice %435 {offsets = [0, 16], sizes = [8, 16], strides = [1, 1]} : vector<8x64xf32> to vector<8x16xf32>
    %437 = arith.mulf %436, %423 : vector<8x16xf32>
    %438 = vector.extract_strided_slice %435 {offsets = [0, 0], sizes = [8, 16], strides = [1, 1]} : vector<8x64xf32> to vector<8x16xf32>
    %439 = vector.extract_strided_slice %435 {offsets = [0, 48], sizes = [8, 16], strides = [1, 1]} : vector<8x64xf32> to vector<8x16xf32>
    %440 = arith.mulf %438, %439 : vector<8x16xf32>
    %441 = arith.addf %437, %440 : vector<8x16xf32>
    %442 = vector.extract_strided_slice %435 {offsets = [0, 32], sizes = [8, 16], strides = [1, 1]} : vector<8x64xf32> to vector<8x16xf32>
    %443 = math.tanh %441 : vector<8x16xf32>
    %444 = arith.mulf %442, %443 : vector<8x16xf32>
    %c8 = arith.constant 8 : index
    %c0_82 = arith.constant 0 : index
    %c0_83 = arith.constant 0 : index
    %445 = vector.load %arg1[%c8, %c0_82, %c0_83] : memref<32x8x128xf32, #tpu.memory_space<vmem>>, vector<1x8x128xf32>
    %446 = vector.shape_cast %445 : vector<1x8x128xf32> to vector<8x128xf32>
    %447 = vector.extract_strided_slice %446 {offsets = [0, 64], sizes = [8, 64], strides = [1, 1]} : vector<8x128xf32> to vector<8x64xf32>
    %cst_84 = arith.constant dense<0.000000e+00> : vector<8x64xf32>
    %448 = tpu.matmul %444, %0, %cst_84 {dimension_numbers = #tpu.dot_dimension_numbers<[1], [0], [0], [1], [0, 0, 1, 1], [], []>} : vector<8x16xf32>, vector<16x64xf32>, vector<8x64xf32> -> vector<8x64xf32>
    %449 = arith.addf %447, %448 : vector<8x64xf32>
    %450 = arith.addf %449, %6 : vector<8x64xf32>
    %451 = math.tanh %450 : vector<8x64xf32>
    %452 = arith.mulf %451, %12 : vector<8x64xf32>
    %453 = arith.addf %452, %15 : vector<8x64xf32>
    %454 = vector.extract_strided_slice %453 {offsets = [0, 16], sizes = [8, 16], strides = [1, 1]} : vector<8x64xf32> to vector<8x16xf32>
    %455 = arith.mulf %454, %441 : vector<8x16xf32>
    %456 = vector.extract_strided_slice %453 {offsets = [0, 0], sizes = [8, 16], strides = [1, 1]} : vector<8x64xf32> to vector<8x16xf32>
    %457 = vector.extract_strided_slice %453 {offsets = [0, 48], sizes = [8, 16], strides = [1, 1]} : vector<8x64xf32> to vector<8x16xf32>
    %458 = arith.mulf %456, %457 : vector<8x16xf32>
    %459 = arith.addf %455, %458 : vector<8x16xf32>
    %460 = vector.extract_strided_slice %453 {offsets = [0, 32], sizes = [8, 16], strides = [1, 1]} : vector<8x64xf32> to vector<8x16xf32>
    %461 = math.tanh %459 : vector<8x16xf32>
    %462 = arith.mulf %460, %461 : vector<8x16xf32>
    %c7 = arith.constant 7 : index
    %c0_85 = arith.constant 0 : index
    %c0_86 = arith.constant 0 : index
    %463 = vector.load %arg1[%c7, %c0_85, %c0_86] : memref<32x8x128xf32, #tpu.memory_space<vmem>>, vector<1x8x128xf32>
    %464 = vector.shape_cast %463 : vector<1x8x128xf32> to vector<8x128xf32>
    %465 = vector.extract_strided_slice %464 {offsets = [0, 64], sizes = [8, 64], strides = [1, 1]} : vector<8x128xf32> to vector<8x64xf32>
    %cst_87 = arith.constant dense<0.000000e+00> : vector<8x64xf32>
    %466 = tpu.matmul %462, %0, %cst_87 {dimension_numbers = #tpu.dot_dimension_numbers<[1], [0], [0], [1], [0, 0, 1, 1], [], []>} : vector<8x16xf32>, vector<16x64xf32>, vector<8x64xf32> -> vector<8x64xf32>
    %467 = arith.addf %465, %466 : vector<8x64xf32>
    %468 = arith.addf %467, %6 : vector<8x64xf32>
    %469 = math.tanh %468 : vector<8x64xf32>
    %470 = arith.mulf %469, %12 : vector<8x64xf32>
    %471 = arith.addf %470, %15 : vector<8x64xf32>
    %472 = vector.extract_strided_slice %471 {offsets = [0, 16], sizes = [8, 16], strides = [1, 1]} : vector<8x64xf32> to vector<8x16xf32>
    %473 = arith.mulf %472, %459 : vector<8x16xf32>
    %474 = vector.extract_strided_slice %471 {offsets = [0, 0], sizes = [8, 16], strides = [1, 1]} : vector<8x64xf32> to vector<8x16xf32>
    %475 = vector.extract_strided_slice %471 {offsets = [0, 48], sizes = [8, 16], strides = [1, 1]} : vector<8x64xf32> to vector<8x16xf32>
    %476 = arith.mulf %474, %475 : vector<8x16xf32>
    %477 = arith.addf %473, %476 : vector<8x16xf32>
    %478 = vector.extract_strided_slice %471 {offsets = [0, 32], sizes = [8, 16], strides = [1, 1]} : vector<8x64xf32> to vector<8x16xf32>
    %479 = math.tanh %477 : vector<8x16xf32>
    %480 = arith.mulf %478, %479 : vector<8x16xf32>
    %c6 = arith.constant 6 : index
    %c0_88 = arith.constant 0 : index
    %c0_89 = arith.constant 0 : index
    %481 = vector.load %arg1[%c6, %c0_88, %c0_89] : memref<32x8x128xf32, #tpu.memory_space<vmem>>, vector<1x8x128xf32>
    %482 = vector.shape_cast %481 : vector<1x8x128xf32> to vector<8x128xf32>
    %483 = vector.extract_strided_slice %482 {offsets = [0, 64], sizes = [8, 64], strides = [1, 1]} : vector<8x128xf32> to vector<8x64xf32>
    %cst_90 = arith.constant dense<0.000000e+00> : vector<8x64xf32>
    %484 = tpu.matmul %480, %0, %cst_90 {dimension_numbers = #tpu.dot_dimension_numbers<[1], [0], [0], [1], [0, 0, 1, 1], [], []>} : vector<8x16xf32>, vector<16x64xf32>, vector<8x64xf32> -> vector<8x64xf32>
    %485 = arith.addf %483, %484 : vector<8x64xf32>
    %486 = arith.addf %485, %6 : vector<8x64xf32>
    %487 = math.tanh %486 : vector<8x64xf32>
    %488 = arith.mulf %487, %12 : vector<8x64xf32>
    %489 = arith.addf %488, %15 : vector<8x64xf32>
    %490 = vector.extract_strided_slice %489 {offsets = [0, 16], sizes = [8, 16], strides = [1, 1]} : vector<8x64xf32> to vector<8x16xf32>
    %491 = arith.mulf %490, %477 : vector<8x16xf32>
    %492 = vector.extract_strided_slice %489 {offsets = [0, 0], sizes = [8, 16], strides = [1, 1]} : vector<8x64xf32> to vector<8x16xf32>
    %493 = vector.extract_strided_slice %489 {offsets = [0, 48], sizes = [8, 16], strides = [1, 1]} : vector<8x64xf32> to vector<8x16xf32>
    %494 = arith.mulf %492, %493 : vector<8x16xf32>
    %495 = arith.addf %491, %494 : vector<8x16xf32>
    %496 = vector.extract_strided_slice %489 {offsets = [0, 32], sizes = [8, 16], strides = [1, 1]} : vector<8x64xf32> to vector<8x16xf32>
    %497 = math.tanh %495 : vector<8x16xf32>
    %498 = arith.mulf %496, %497 : vector<8x16xf32>
    %c5 = arith.constant 5 : index
    %c0_91 = arith.constant 0 : index
    %c0_92 = arith.constant 0 : index
    %499 = vector.load %arg1[%c5, %c0_91, %c0_92] : memref<32x8x128xf32, #tpu.memory_space<vmem>>, vector<1x8x128xf32>
    %500 = vector.shape_cast %499 : vector<1x8x128xf32> to vector<8x128xf32>
    %501 = vector.extract_strided_slice %500 {offsets = [0, 64], sizes = [8, 64], strides = [1, 1]} : vector<8x128xf32> to vector<8x64xf32>
    %cst_93 = arith.constant dense<0.000000e+00> : vector<8x64xf32>
    %502 = tpu.matmul %498, %0, %cst_93 {dimension_numbers = #tpu.dot_dimension_numbers<[1], [0], [0], [1], [0, 0, 1, 1], [], []>} : vector<8x16xf32>, vector<16x64xf32>, vector<8x64xf32> -> vector<8x64xf32>
    %503 = arith.addf %501, %502 : vector<8x64xf32>
    %504 = arith.addf %503, %6 : vector<8x64xf32>
    %505 = math.tanh %504 : vector<8x64xf32>
    %506 = arith.mulf %505, %12 : vector<8x64xf32>
    %507 = arith.addf %506, %15 : vector<8x64xf32>
    %508 = vector.extract_strided_slice %507 {offsets = [0, 16], sizes = [8, 16], strides = [1, 1]} : vector<8x64xf32> to vector<8x16xf32>
    %509 = arith.mulf %508, %495 : vector<8x16xf32>
    %510 = vector.extract_strided_slice %507 {offsets = [0, 0], sizes = [8, 16], strides = [1, 1]} : vector<8x64xf32> to vector<8x16xf32>
    %511 = vector.extract_strided_slice %507 {offsets = [0, 48], sizes = [8, 16], strides = [1, 1]} : vector<8x64xf32> to vector<8x16xf32>
    %512 = arith.mulf %510, %511 : vector<8x16xf32>
    %513 = arith.addf %509, %512 : vector<8x16xf32>
    %514 = vector.extract_strided_slice %507 {offsets = [0, 32], sizes = [8, 16], strides = [1, 1]} : vector<8x64xf32> to vector<8x16xf32>
    %515 = math.tanh %513 : vector<8x16xf32>
    %516 = arith.mulf %514, %515 : vector<8x16xf32>
    %c4 = arith.constant 4 : index
    %c0_94 = arith.constant 0 : index
    %c0_95 = arith.constant 0 : index
    %517 = vector.load %arg1[%c4, %c0_94, %c0_95] : memref<32x8x128xf32, #tpu.memory_space<vmem>>, vector<1x8x128xf32>
    %518 = vector.shape_cast %517 : vector<1x8x128xf32> to vector<8x128xf32>
    %519 = vector.extract_strided_slice %518 {offsets = [0, 64], sizes = [8, 64], strides = [1, 1]} : vector<8x128xf32> to vector<8x64xf32>
    %cst_96 = arith.constant dense<0.000000e+00> : vector<8x64xf32>
    %520 = tpu.matmul %516, %0, %cst_96 {dimension_numbers = #tpu.dot_dimension_numbers<[1], [0], [0], [1], [0, 0, 1, 1], [], []>} : vector<8x16xf32>, vector<16x64xf32>, vector<8x64xf32> -> vector<8x64xf32>
    %521 = arith.addf %519, %520 : vector<8x64xf32>
    %522 = arith.addf %521, %6 : vector<8x64xf32>
    %523 = math.tanh %522 : vector<8x64xf32>
    %524 = arith.mulf %523, %12 : vector<8x64xf32>
    %525 = arith.addf %524, %15 : vector<8x64xf32>
    %526 = vector.extract_strided_slice %525 {offsets = [0, 16], sizes = [8, 16], strides = [1, 1]} : vector<8x64xf32> to vector<8x16xf32>
    %527 = arith.mulf %526, %513 : vector<8x16xf32>
    %528 = vector.extract_strided_slice %525 {offsets = [0, 0], sizes = [8, 16], strides = [1, 1]} : vector<8x64xf32> to vector<8x16xf32>
    %529 = vector.extract_strided_slice %525 {offsets = [0, 48], sizes = [8, 16], strides = [1, 1]} : vector<8x64xf32> to vector<8x16xf32>
    %530 = arith.mulf %528, %529 : vector<8x16xf32>
    %531 = arith.addf %527, %530 : vector<8x16xf32>
    %532 = vector.extract_strided_slice %525 {offsets = [0, 32], sizes = [8, 16], strides = [1, 1]} : vector<8x64xf32> to vector<8x16xf32>
    %533 = math.tanh %531 : vector<8x16xf32>
    %534 = arith.mulf %532, %533 : vector<8x16xf32>
    %c3 = arith.constant 3 : index
    %c0_97 = arith.constant 0 : index
    %c0_98 = arith.constant 0 : index
    %535 = vector.load %arg1[%c3, %c0_97, %c0_98] : memref<32x8x128xf32, #tpu.memory_space<vmem>>, vector<1x8x128xf32>
    %536 = vector.shape_cast %535 : vector<1x8x128xf32> to vector<8x128xf32>
    %537 = vector.extract_strided_slice %536 {offsets = [0, 64], sizes = [8, 64], strides = [1, 1]} : vector<8x128xf32> to vector<8x64xf32>
    %cst_99 = arith.constant dense<0.000000e+00> : vector<8x64xf32>
    %538 = tpu.matmul %534, %0, %cst_99 {dimension_numbers = #tpu.dot_dimension_numbers<[1], [0], [0], [1], [0, 0, 1, 1], [], []>} : vector<8x16xf32>, vector<16x64xf32>, vector<8x64xf32> -> vector<8x64xf32>
    %539 = arith.addf %537, %538 : vector<8x64xf32>
    %540 = arith.addf %539, %6 : vector<8x64xf32>
    %541 = math.tanh %540 : vector<8x64xf32>
    %542 = arith.mulf %541, %12 : vector<8x64xf32>
    %543 = arith.addf %542, %15 : vector<8x64xf32>
    %544 = vector.extract_strided_slice %543 {offsets = [0, 16], sizes = [8, 16], strides = [1, 1]} : vector<8x64xf32> to vector<8x16xf32>
    %545 = arith.mulf %544, %531 : vector<8x16xf32>
    %546 = vector.extract_strided_slice %543 {offsets = [0, 0], sizes = [8, 16], strides = [1, 1]} : vector<8x64xf32> to vector<8x16xf32>
    %547 = vector.extract_strided_slice %543 {offsets = [0, 48], sizes = [8, 16], strides = [1, 1]} : vector<8x64xf32> to vector<8x16xf32>
    %548 = arith.mulf %546, %547 : vector<8x16xf32>
    %549 = arith.addf %545, %548 : vector<8x16xf32>
    %550 = vector.extract_strided_slice %543 {offsets = [0, 32], sizes = [8, 16], strides = [1, 1]} : vector<8x64xf32> to vector<8x16xf32>
    %551 = math.tanh %549 : vector<8x16xf32>
    %552 = arith.mulf %550, %551 : vector<8x16xf32>
    %c2 = arith.constant 2 : index
    %c0_100 = arith.constant 0 : index
    %c0_101 = arith.constant 0 : index
    %553 = vector.load %arg1[%c2, %c0_100, %c0_101] : memref<32x8x128xf32, #tpu.memory_space<vmem>>, vector<1x8x128xf32>
    %554 = vector.shape_cast %553 : vector<1x8x128xf32> to vector<8x128xf32>
    %555 = vector.extract_strided_slice %554 {offsets = [0, 64], sizes = [8, 64], strides = [1, 1]} : vector<8x128xf32> to vector<8x64xf32>
    %cst_102 = arith.constant dense<0.000000e+00> : vector<8x64xf32>
    %556 = tpu.matmul %552, %0, %cst_102 {dimension_numbers = #tpu.dot_dimension_numbers<[1], [0], [0], [1], [0, 0, 1, 1], [], []>} : vector<8x16xf32>, vector<16x64xf32>, vector<8x64xf32> -> vector<8x64xf32>
    %557 = arith.addf %555, %556 : vector<8x64xf32>
    %558 = arith.addf %557, %6 : vector<8x64xf32>
    %559 = math.tanh %558 : vector<8x64xf32>
    %560 = arith.mulf %559, %12 : vector<8x64xf32>
    %561 = arith.addf %560, %15 : vector<8x64xf32>
    %562 = vector.extract_strided_slice %561 {offsets = [0, 16], sizes = [8, 16], strides = [1, 1]} : vector<8x64xf32> to vector<8x16xf32>
    %563 = arith.mulf %562, %549 : vector<8x16xf32>
    %564 = vector.extract_strided_slice %561 {offsets = [0, 0], sizes = [8, 16], strides = [1, 1]} : vector<8x64xf32> to vector<8x16xf32>
    %565 = vector.extract_strided_slice %561 {offsets = [0, 48], sizes = [8, 16], strides = [1, 1]} : vector<8x64xf32> to vector<8x16xf32>
    %566 = arith.mulf %564, %565 : vector<8x16xf32>
    %567 = arith.addf %563, %566 : vector<8x16xf32>
    %568 = vector.extract_strided_slice %561 {offsets = [0, 32], sizes = [8, 16], strides = [1, 1]} : vector<8x64xf32> to vector<8x16xf32>
    %569 = math.tanh %567 : vector<8x16xf32>
    %570 = arith.mulf %568, %569 : vector<8x16xf32>
    %c1 = arith.constant 1 : index
    %c0_103 = arith.constant 0 : index
    %c0_104 = arith.constant 0 : index
    %571 = vector.load %arg1[%c1, %c0_103, %c0_104] : memref<32x8x128xf32, #tpu.memory_space<vmem>>, vector<1x8x128xf32>
    %572 = vector.shape_cast %571 : vector<1x8x128xf32> to vector<8x128xf32>
    %573 = vector.extract_strided_slice %572 {offsets = [0, 64], sizes = [8, 64], strides = [1, 1]} : vector<8x128xf32> to vector<8x64xf32>
    %cst_105 = arith.constant dense<0.000000e+00> : vector<8x64xf32>
    %574 = tpu.matmul %570, %0, %cst_105 {dimension_numbers = #tpu.dot_dimension_numbers<[1], [0], [0], [1], [0, 0, 1, 1], [], []>} : vector<8x16xf32>, vector<16x64xf32>, vector<8x64xf32> -> vector<8x64xf32>
    %575 = arith.addf %573, %574 : vector<8x64xf32>
    %576 = arith.addf %575, %6 : vector<8x64xf32>
    %577 = math.tanh %576 : vector<8x64xf32>
    %578 = arith.mulf %577, %12 : vector<8x64xf32>
    %579 = arith.addf %578, %15 : vector<8x64xf32>
    %580 = vector.extract_strided_slice %579 {offsets = [0, 16], sizes = [8, 16], strides = [1, 1]} : vector<8x64xf32> to vector<8x16xf32>
    %581 = arith.mulf %580, %567 : vector<8x16xf32>
    %582 = vector.extract_strided_slice %579 {offsets = [0, 0], sizes = [8, 16], strides = [1, 1]} : vector<8x64xf32> to vector<8x16xf32>
    %583 = vector.extract_strided_slice %579 {offsets = [0, 48], sizes = [8, 16], strides = [1, 1]} : vector<8x64xf32> to vector<8x16xf32>
    %584 = arith.mulf %582, %583 : vector<8x16xf32>
    %585 = arith.addf %581, %584 : vector<8x16xf32>
    %586 = vector.extract_strided_slice %579 {offsets = [0, 32], sizes = [8, 16], strides = [1, 1]} : vector<8x64xf32> to vector<8x16xf32>
    %587 = math.tanh %585 : vector<8x16xf32>
    %588 = arith.mulf %586, %587 : vector<8x16xf32>
    %c0_106 = arith.constant 0 : index
    %c0_107 = arith.constant 0 : index
    %c0_108 = arith.constant 0 : index
    %589 = vector.load %arg1[%c0_106, %c0_107, %c0_108] : memref<32x8x128xf32, #tpu.memory_space<vmem>>, vector<1x8x128xf32>
    %590 = vector.shape_cast %589 : vector<1x8x128xf32> to vector<8x128xf32>
    %591 = vector.extract_strided_slice %590 {offsets = [0, 64], sizes = [8, 64], strides = [1, 1]} : vector<8x128xf32> to vector<8x64xf32>
    %cst_109 = arith.constant dense<0.000000e+00> : vector<8x64xf32>
    %592 = tpu.matmul %588, %0, %cst_109 {dimension_numbers = #tpu.dot_dimension_numbers<[1], [0], [0], [1], [0, 0, 1, 1], [], []>} : vector<8x16xf32>, vector<16x64xf32>, vector<8x64xf32> -> vector<8x64xf32>
    %593 = arith.addf %591, %592 : vector<8x64xf32>
    %594 = arith.addf %593, %6 : vector<8x64xf32>
    %595 = math.tanh %594 : vector<8x64xf32>
    %596 = arith.mulf %595, %12 : vector<8x64xf32>
    %597 = arith.addf %596, %15 : vector<8x64xf32>
    %598 = vector.extract_strided_slice %597 {offsets = [0, 16], sizes = [8, 16], strides = [1, 1]} : vector<8x64xf32> to vector<8x16xf32>
    %599 = arith.mulf %598, %585 : vector<8x16xf32>
    %600 = vector.extract_strided_slice %597 {offsets = [0, 0], sizes = [8, 16], strides = [1, 1]} : vector<8x64xf32> to vector<8x16xf32>
    %601 = vector.extract_strided_slice %597 {offsets = [0, 48], sizes = [8, 16], strides = [1, 1]} : vector<8x64xf32> to vector<8x16xf32>
    %602 = arith.mulf %600, %601 : vector<8x16xf32>
    %603 = arith.addf %599, %602 : vector<8x16xf32>
    %604 = vector.extract_strided_slice %597 {offsets = [0, 32], sizes = [8, 16], strides = [1, 1]} : vector<8x64xf32> to vector<8x16xf32>
    %605 = math.tanh %603 : vector<8x16xf32>
    %606 = arith.mulf %604, %605 : vector<8x16xf32>
    %607 = tpu.concatenate %28, %606 in 1 : vector<8x16xf32>, vector<8x16xf32> -> vector<8x32xf32>
    %c0_110 = arith.constant 0 : index
    %c0_111 = arith.constant 0 : index
    %608 = vector.load %arg5[%c0_110, %c0_111] : memref<8x32xf32, #tpu.memory_space<vmem>>, vector<8x32xf32>
    tpu.vector_store %arg5[%c0_110, %c0_111], %607 {strides = array<i32>} : memref<8x32xf32, #tpu.memory_space<vmem>>, vector<8x32xf32>,
    return
  }
  func.func @transform_0(%arg0: i32) -> (i32, i32, i32) {
    %c0_i32 = arith.constant 0 : i32
    %c0_i32_0 = arith.constant 0 : i32
    %c0_i32_1 = arith.constant 0 : i32
    return %c0_i32, %arg0, %c0_i32_0 : i32, i32, i32
  }
  func.func @transform_1(%arg0: i32) -> (i32, i32) {
    %c0_i32 = arith.constant 0 : i32
    %c0_i32_0 = arith.constant 0 : i32
    %c0_i32_1 = arith.constant 0 : i32
    return %c0_i32, %c0_i32_0 : i32, i32
  }
  func.func @transform_2(%arg0: i32) -> (i32, i32) {
    %c0_i32 = arith.constant 0 : i32
    %c0_i32_0 = arith.constant 0 : i32
    %c0_i32_1 = arith.constant 0 : i32
    return %c0_i32, %c0_i32_0 : i32, i32
  }
  func.func @transform_3(%arg0: i32) -> (i32, i32) {
    %c0_i32 = arith.constant 0 : i32
    %c0_i32_0 = arith.constant 0 : i32
    %c0_i32_1 = arith.constant 0 : i32
    return %c0_i32, %c0_i32_0 : i32, i32
  }
  func.func @transform_4(%arg0: i32) -> (i32, i32) {
    %c0_i32 = arith.constant 0 : i32
    %c0_i32_0 = arith.constant 0 : i32
    return %arg0, %c0_i32 : i32, i32
  }
}

</mosaic_0001>

<llo_original>
// kernel: tpu_custom_call.1
$region0: #{tpu_custom_call.1}
  #allocation0 [shape = 'u32[]', space=smem, size = 0x4, offset = 0x4, fixed_abs, tag = 'smem constant byte address 0x4 - core index']
  #allocation1 [shape = 'u32[72,128]{1,0:T(1,128)}', space=vmem, size = 0x9000, scoped, tag = 'internal scratch']
  %s0 = inlined_call_operand.hbm [shape: f32[32,8,128], index: 0, kind: input, shape index: {}]
  %s1 = inlined_call_operand.hbm [shape: f32[16,64], index: 1, kind: input, shape index: {}]
  %s2 = inlined_call_operand.vmem [shape: f32[1,64], index: 2, kind: input, shape index: {}]
  %s3 = inlined_call_operand.vmem [shape: f32[1,64], index: 3, kind: input, shape index: {}]
  %s4 = inlined_call_operand.hbm [shape: f32[8,32], index: 4, kind: output, shape index: {}]
  %s5 = sld [smem:[#allocation0]]
  $region34: #{tpu_custom_call.1} parent=0
    _
  %s7 = ssub.s32 1, %s5
  %s8 = scalar_select 0, %s7, %s5
  $region1: #{tpu_custom_call.1} parent=0
    #allocation2 [shape = 'u8[131072]{0}', space=vmem, size = 0x20000, scoped, tag = 'input window, operand 0, single buffered']
    #allocation3 [shape = 's32[1]{0}', space=sflag, size = 0x4, scoped, tag = 'scoped memory for tpu_custom_call.1']
    #allocation4 [shape = 's32[1]{0}', space=sflag, size = 0x4, scoped, tag = 'scoped memory for tpu_custom_call.1']
    #allocation5 [shape = 'u8[8192]{0}', space=vmem, size = 0x2000, scoped, tag = 'input window, operand 1, single buffered']
    #allocation6 [shape = 's32[1]{0}', space=sflag, size = 0x4, scoped, tag = 'scoped memory for tpu_custom_call.1']
    #allocation7 [shape = 'u8[4096]{0}', space=vmem, size = 0x1000, scoped, tag = 'output window, operand 0, single buffered']
    %9 = vsyncpa [#allocation3], 0
    %10 = vsyncpa [#allocation6], 0
    %11 = vsyncpa [#allocation4], 0
    // Predicated region
    $region2: #{tpu_custom_call.1} parent=1 // pred_check
      _
    $region3: #{tpu_custom_call.1} parent=1 // pred_check_branch
      %13 = sbr.rel (0) target = $region5
    $region4: #{tpu_custom_call.1} parent=1 // pred_region
      %15 = vsyncadd [#allocation3], 0
      %s16 = sshll.u32 %s0, 4
      %s17 = int_to_ptr.hbm [resolvable:$true] %s16
      %s18 = sshll.u32 [#allocation2], 4
      %s19 = int_to_ptr.vmem [resolvable:$true] %s18
      %24 = dma.hbm_to_vmem [thread:$0]  %s17, 4096, %s19, [#allocation3], 128, 128, 8
    $region5: #{tpu_custom_call.1} parent=1 // pred_fallthru
      _
    // Predicated region
    $region6: #{tpu_custom_call.1} parent=1 // pred_check
      _
    $region7: #{tpu_custom_call.1} parent=1 // pred_check_branch
      %26 = sbr.rel (0) target = $region9
    $region8: #{tpu_custom_call.1} parent=1 // pred_region
      %28 = vsyncadd [#allocation6], 0
      %s29 = sshll.u32 %s1, 4
      %s30 = int_to_ptr.hbm [resolvable:$true] %s29
      %s31 = sshll.u32 [#allocation5], 4
      %s32 = int_to_ptr.vmem [resolvable:$true] %s31
      %37 = dma.hbm_to_vmem [thread:$0]  %s30, 256, %s32, [#allocation6], 128, 128, 8
    $region9: #{tpu_custom_call.1} parent=1 // pred_fallthru
      _
    // Predicated region
    $region10: #{tpu_custom_call.1} parent=1 // pred_check
      _
    $region11: #{tpu_custom_call.1} parent=1 // pred_check_branch
      %39 = sbr.rel (0) target = $region13
    $region12: #{tpu_custom_call.1} parent=1 // pred_region
      _
    $region13: #{tpu_custom_call.1} parent=1 // pred_fallthru
      _
    // Predicated region
    $region14: #{tpu_custom_call.1} parent=1 // pred_check
      _
    $region15: #{tpu_custom_call.1} parent=1 // pred_check_branch
      %41 = sbr.rel (0) target = $region17
    $region16: #{tpu_custom_call.1} parent=1 // pred_region
      _
    $region17: #{tpu_custom_call.1} parent=1 // pred_fallthru
      _
    // Predicated region
    $region18: #{tpu_custom_call.1} parent=1 // pred_check
      _
    $region19: #{tpu_custom_call.1} parent=1 // pred_check_branch
      %43 = sbr.rel (0) target = $region21
    $region20: #{tpu_custom_call.1} parent=1 // pred_region
      %45 = dma.done [#allocation3], 4096
    $region21: #{tpu_custom_call.1} parent=1 // pred_fallthru
      _
    // Predicated region
    $region22: #{tpu_custom_call.1} parent=1 // pred_check
      _
    $region23: #{tpu_custom_call.1} parent=1 // pred_check_branch
      %47 = sbr.rel (0) target = $region25
    $region24: #{tpu_custom_call.1} parent=1 // pred_region
      %49 = dma.done [#allocation6], 256
    $region25: #{tpu_custom_call.1} parent=1 // pred_fallthru
      _
    %v50 = vld [vmem:[#allocation5] sm:$0xff]
    %v51 = vld [vmem:[#allocation5 + $0x8] sm:$0xff]
    %v52 = vld [vmem:[%s2] sm:$0x1]
    %v54 = vperm.slane %v52, 0
    %v56 = vld [vmem:[%s3] sm:$0x1]
    %v58 = vperm.slane %v56, 0
    %v59 = vlaneseq
    %v60 = vand.u32 %v59, 127
    %vm61 = vcmp.lt.s32.totalorder %v60, 48
    %v62 = vsel %vm61, 0.5, 1.0
    %v63 = vsel %vm61, 0.5, 0.0
    %v64 = vld [vmem:[#allocation2] sm:$0xff]
    %v65 = vadd.f32 %v64, %v54
    %v66 = vtanh.pop %v65
    %v67 = vmul.f32 %v66, %v62
    %v68 = vadd.f32 %v67, %v63
    %70 = vrot.lane.b32.xlu0 %v68, 80
    %v71 = vpop.permute.xlu0 %70
    %v73 = vmul.f32 %v68, %v71
    %v74 = vtanh.pop %v73
    %76 = vrot.lane.b32.xlu0 %v74, 32
    %v77 = vpop.permute.xlu0 %76
    %v79 = vmul.f32 %v68, %v77
    %s80 = scalar_lea.vmem [#allocation2], 248
    %v81 = vld [vmem:[%s80] sm:$0xff]
    %vm82 = vcmask 130048
    %v84 = vsel %vm82, 0.0, 0
    %86 = vmatpush.msra.mxu0 0.0
    %87 = vmatpush.msra.mxu0 0.0
    %88 = vmatpush.msra.mxu0 0.0
    %89 = vmatpush.msra.mxu0 0.0
    %90 = vmatpush.msra.mxu0 0.0
    %91 = vmatpush.msra.mxu0 0.0
    %92 = vmatpush.msra.mxu0 0.0
    %93 = vmatpush.msra.mxu0 0.0
    %94 = vmatpush.msra.mxu0 0.0
    %95 = vmatpush.msra.mxu0 0.0
    %96 = vmatpush.msra.mxu0 0.0
    %97 = vmatpush.msra.mxu0 0.0
    %98 = vmatpush.msra.mxu0 0.0
    %99 = vmatpush.msra.mxu0 0.0
    %100 = vmatpush.msra.mxu0 %v51
    %101 = vmatpush.msra.mxu0 %v50
    %102 = vmatmul.f32.gmra.mxu0 %v84
    %v103 = vpop.f32.mrf.mxu0
    %v104 = vadd.f32 0.0, %v103
    %105 = vdwg.mxu0
    %107 = vrot.lane.b32.xlu0 %v104, 64
    %v108 = vpop.permute.xlu0 %107
    %v110 = vadd.f32 %v81, %v108
    %111 = vrot.lane.b32.xlu0 %v58, 64
    %v112 = vpop.permute.xlu0 %111
    %v114 = vadd.f32 %v110, %v112
    %v115 = vtanh.pop %v114
    %117 = vrot.lane.b32.xlu0 %v62, 64
    %v118 = vpop.permute.xlu0 %117
    %v120 = vmul.f32 %v115, %v118
    %122 = vrot.lane.b32.xlu0 %v63, 64
    %v123 = vpop.permute.xlu0 %122
    %v125 = vadd.f32 %v120, %v123
    %v126 = vmul.f32 %v125, 0.0
    %128 = vrot.lane.b32.xlu0 %v125, 80
    %v129 = vpop.permute.xlu0 %128
    %v131 = vmul.f32 %v125, %v129
    %133 = vrot.lane.b32.xlu0 %v131, 16
    %v134 = vpop.permute.xlu0 %133
    %v136 = vadd.f32 %v126, %v134
    %v137 = vtanh.pop %v136
    %139 = vrot.lane.b32.xlu0 %v137, 16
    %v140 = vpop.permute.xlu0 %139
    %v142 = vmul.f32 %v125, %v140
    %s143 = scalar_lea.vmem [#allocation2], 240
    %v144 = vld [vmem:[%s143] sm:$0xff]
    %146 = vrot.lane.b32.xlu0 %v142, 32
    %v147 = vpop.permute.xlu0 %146
    %v148 = vsel %vm82, %v147, 0
    %150 = vmatpush.msra.mxu0 0.0
    %151 = vmatpush.msra.mxu0 0.0
    %152 = vmatpush.msra.mxu0 0.0
    %153 = vmatpush.msra.mxu0 0.0
    %154 = vmatpush.msra.mxu0 0.0
    %155 = vmatpush.msra.mxu0 0.0
    %156 = vmatpush.msra.mxu0 0.0
    %157 = vmatpush.msra.mxu0 0.0
    %158 = vmatpush.msra.mxu0 0.0
    %159 = vmatpush.msra.mxu0 0.0
    %160 = vmatpush.msra.mxu0 0.0
    %161 = vmatpush.msra.mxu0 0.0
    %162 = vmatpush.msra.mxu0 0.0
    %163 = vmatpush.msra.mxu0 0.0
    %164 = vmatpush.msra.mxu0 %v51
    %165 = vmatpush.msra.mxu0 %v50
    %166 = vmatmul.f32.gmra.mxu0 %v148
    %v167 = vpop.f32.mrf.mxu0
    %v168 = vadd.f32 0.0, %v167
    %169 = vdwg.mxu0
    %171 = vrot.lane.b32.xlu0 %v168, 64
    %v172 = vpop.permute.xlu0 %171
    %v174 = vadd.f32 %v144, %v172
    %v175 = vadd.f32 %v174, %v112
    %v176 = vtanh.pop %v175
    %v177 = vmul.f32 %v176, %v118
    %v178 = vadd.f32 %v177, %v123
    %v179 = vmul.f32 %v178, %v136
    %181 = vrot.lane.b32.xlu0 %v178, 80
    %v182 = vpop.permute.xlu0 %181
    %v184 = vmul.f32 %v178, %v182
    %186 = vrot.lane.b32.xlu0 %v184, 16
    %v187 = vpop.permute.xlu0 %186
    %v189 = vadd.f32 %v179, %v187
    %v190 = vtanh.pop %v189
    %192 = vrot.lane.b32.xlu0 %v190, 16
    %v193 = vpop.permute.xlu0 %192
    %v195 = vmul.f32 %v178, %v193
    %s196 = scalar_lea.vmem [#allocation2], 232
    %v197 = vld [vmem:[%s196] sm:$0xff]
    %199 = vrot.lane.b32.xlu0 %v195, 32
    %v200 = vpop.permute.xlu0 %199
    %v201 = vsel %vm82, %v200, 0
    %203 = vmatpush.msra.mxu0 0.0
    %204 = vmatpush.msra.mxu0 0.0
    %205 = vmatpush.msra.mxu0 0.0
    %206 = vmatpush.msra.mxu0 0.0
    %207 = vmatpush.msra.mxu0 0.0
    %208 = vmatpush.msra.mxu0 0.0
    %209 = vmatpush.msra.mxu0 0.0
    %210 = vmatpush.msra.mxu0 0.0
    %211 = vmatpush.msra.mxu0 0.0
    %212 = vmatpush.msra.mxu0 0.0
    %213 = vmatpush.msra.mxu0 0.0
    %214 = vmatpush.msra.mxu0 0.0
    %215 = vmatpush.msra.mxu0 0.0
    %216 = vmatpush.msra.mxu0 0.0
    %217 = vmatpush.msra.mxu0 %v51
    %218 = vmatpush.msra.mxu0 %v50
    %219 = vmatmul.f32.gmra.mxu0 %v201
    %v220 = vpop.f32.mrf.mxu0
    %v221 = vadd.f32 0.0, %v220
    %222 = vdwg.mxu0
    %224 = vrot.lane.b32.xlu0 %v221, 64
    %v225 = vpop.permute.xlu0 %224
    %v227 = vadd.f32 %v197, %v225
    %v228 = vadd.f32 %v227, %v112
    %v229 = vtanh.pop %v228
    %v230 = vmul.f32 %v229, %v118
    %v231 = vadd.f32 %v230, %v123
    %v232 = vmul.f32 %v231, %v189
    %234 = vrot.lane.b32.xlu0 %v231, 80
    %v235 = vpop.permute.xlu0 %234
    %v237 = vmul.f32 %v231, %v235
    %239 = vrot.lane.b32.xlu0 %v237, 16
    %v240 = vpop.permute.xlu0 %239
    %v242 = vadd.f32 %v232, %v240
    %v243 = vtanh.pop %v242
    %245 = vrot.lane.b32.xlu0 %v243, 16
    %v246 = vpop.permute.xlu0 %245
    %v248 = vmul.f32 %v231, %v246
    %s249 = scalar_lea.vmem [#allocation2], 224
    %v250 = vld [vmem:[%s249] sm:$0xff]
    %252 = vrot.lane.b32.xlu0 %v248, 32
    %v253 = vpop.permute.xlu0 %252
    %v254 = vsel %vm82, %v253, 0
    %256 = vmatpush.msra.mxu0 0.0
    %257 = vmatpush.msra.mxu0 0.0
    %258 = vmatpush.msra.mxu0 0.0
    %259 = vmatpush.msra.mxu0 0.0
    %260 = vmatpush.msra.mxu0 0.0
    %261 = vmatpush.msra.mxu0 0.0
    %262 = vmatpush.msra.mxu0 0.0
    %263 = vmatpush.msra.mxu0 0.0
    %264 = vmatpush.msra.mxu0 0.0
    %265 = vmatpush.msra.mxu0 0.0
    %266 = vmatpush.msra.mxu0 0.0
    %267 = vmatpush.msra.mxu0 0.0
    %268 = vmatpush.msra.mxu0 0.0
    %269 = vmatpush.msra.mxu0 0.0
    %270 = vmatpush.msra.mxu0 %v51
    %271 = vmatpush.msra.mxu0 %v50
    %272 = vmatmul.f32.gmra.mxu0 %v254
    %v273 = vpop.f32.mrf.mxu0
    %v274 = vadd.f32 0.0, %v273
    %275 = vdwg.mxu0
    %277 = vrot.lane.b32.xlu0 %v274, 64
    %v278 = vpop.permute.xlu0 %277
    %v280 = vadd.f32 %v250, %v278
    %v281 = vadd.f32 %v280, %v112
    %v282 = vtanh.pop %v281
    %v283 = vmul.f32 %v282, %v118
    %v284 = vadd.f32 %v283, %v123
    %v285 = vmul.f32 %v284, %v242
    %287 = vrot.lane.b32.xlu0 %v284, 80
    %v288 = vpop.permute.xlu0 %287
    %v290 = vmul.f32 %v284, %v288
    %292 = vrot.lane.b32.xlu0 %v290, 16
    %v293 = vpop.permute.xlu0 %292
    %v295 = vadd.f32 %v285, %v293
    %v296 = vtanh.pop %v295
    %298 = vrot.lane.b32.xlu0 %v296, 16
    %v299 = vpop.permute.xlu0 %298
    %v301 = vmul.f32 %v284, %v299
    %s302 = scalar_lea.vmem [#allocation2], 216
    %v303 = vld [vmem:[%s302] sm:$0xff]
    %305 = vrot.lane.b32.xlu0 %v301, 32
    %v306 = vpop.permute.xlu0 %305
    %v307 = vsel %vm82, %v306, 0
    %309 = vmatpush.msra.mxu0 0.0
    %310 = vmatpush.msra.mxu0 0.0
    %311 = vmatpush.msra.mxu0 0.0
    %312 = vmatpush.msra.mxu0 0.0
    %313 = vmatpush.msra.mxu0 0.0
    %314 = vmatpush.msra.mxu0 0.0
    %315 = vmatpush.msra.mxu0 0.0
    %316 = vmatpush.msra.mxu0 0.0
    %317 = vmatpush.msra.mxu0 0.0
    %318 = vmatpush.msra.mxu0 0.0
    %319 = vmatpush.msra.mxu0 0.0
    %320 = vmatpush.msra.mxu0 0.0
    %321 = vmatpush.msra.mxu0 0.0
    %322 = vmatpush.msra.mxu0 0.0
    %323 = vmatpush.msra.mxu0 %v51
    %324 = vmatpush.msra.mxu0 %v50
    %325 = vmatmul.f32.gmra.mxu0 %v307
    %v326 = vpop.f32.mrf.mxu0
    %v327 = vadd.f32 0.0, %v326
    %328 = vdwg.mxu0
    %330 = vrot.lane.b32.xlu0 %v327, 64
    %v331 = vpop.permute.xlu0 %330
    %v333 = vadd.f32 %v303, %v331
    %v334 = vadd.f32 %v333, %v112
    %v335 = vtanh.pop %v334
    %v336 = vmul.f32 %v335, %v118
    %v337 = vadd.f32 %v336, %v123
    %v338 = vmul.f32 %v337, %v295
    %340 = vrot.lane.b32.xlu0 %v337, 80
    %v341 = vpop.permute.xlu0 %340
    %v343 = vmul.f32 %v337, %v341
    %345 = vrot.lane.b32.xlu0 %v343, 16
    %v346 = vpop.permute.xlu0 %345
    %v348 = vadd.f32 %v338, %v346
    %v349 = vtanh.pop %v348
    %351 = vrot.lane.b32.xlu0 %v349, 16
    %v352 = vpop.permute.xlu0 %351
    %v354 = vmul.f32 %v337, %v352
    %s355 = scalar_lea.vmem [#allocation2], 208
    %v356 = vld [vmem:[%s355] sm:$0xff]
    %358 = vrot.lane.b32.xlu0 %v354, 32
    %v359 = vpop.permute.xlu0 %358
    %v360 = vsel %vm82, %v359, 0
    %362 = vmatpush.msra.mxu0 0.0
    %363 = vmatpush.msra.mxu0 0.0
    %364 = vmatpush.msra.mxu0 0.0
    %365 = vmatpush.msra.mxu0 0.0
    %366 = vmatpush.msra.mxu0 0.0
    %367 = vmatpush.msra.mxu0 0.0
    %368 = vmatpush.msra.mxu0 0.0
    %369 = vmatpush.msra.mxu0 0.0
    %370 = vmatpush.msra.mxu0 0.0
    %371 = vmatpush.msra.mxu0 0.0
    %372 = vmatpush.msra.mxu0 0.0
    %373 = vmatpush.msra.mxu0 0.0
    %374 = vmatpush.msra.mxu0 0.0
    %375 = vmatpush.msra.mxu0 0.0
    %376 = vmatpush.msra.mxu0 %v51
    %377 = vmatpush.msra.mxu0 %v50
    %378 = vmatmul.f32.gmra.mxu0 %v360
    %v379 = vpop.f32.mrf.mxu0
    %v380 = vadd.f32 0.0, %v379
    %381 = vdwg.mxu0
    %383 = vrot.lane.b32.xlu0 %v380, 64
    %v384 = vpop.permute.xlu0 %383
    %v386 = vadd.f32 %v356, %v384
    %v387 = vadd.f32 %v386, %v112
    %v388 = vtanh.pop %v387
    %v389 = vmul.f32 %v388, %v118
    %v390 = vadd.f32 %v389, %v123
    %v391 = vmul.f32 %v390, %v348
    %393 = vrot.lane.b32.xlu0 %v390, 80
    %v394 = vpop.permute.xlu0 %393
    %v396 = vmul.f32 %v390, %v394
    %398 = vrot.lane.b32.xlu0 %v396, 16
    %v399 = vpop.permute.xlu0 %398
    %v401 = vadd.f32 %v391, %v399
    %v402 = vtanh.pop %v401
    %404 = vrot.lane.b32.xlu0 %v402, 16
    %v405 = vpop.permute.xlu0 %404
    %v407 = vmul.f32 %v390, %v405
    %s408 = scalar_lea.vmem [#allocation2], 200
    %v409 = vld [vmem:[%s408] sm:$0xff]
    %411 = vrot.lane.b32.xlu0 %v407, 32
    %v412 = vpop.permute.xlu0 %411
    %v413 = vsel %vm82, %v412, 0
    %415 = vmatpush.msra.mxu0 0.0
    %416 = vmatpush.msra.mxu0 0.0
    %417 = vmatpush.msra.mxu0 0.0
    %418 = vmatpush.msra.mxu0 0.0
    %419 = vmatpush.msra.mxu0 0.0
    %420 = vmatpush.msra.mxu0 0.0
    %421 = vmatpush.msra.mxu0 0.0
    %422 = vmatpush.msra.mxu0 0.0
    %423 = vmatpush.msra.mxu0 0.0
    %424 = vmatpush.msra.mxu0 0.0
    %425 = vmatpush.msra.mxu0 0.0
    %426 = vmatpush.msra.mxu0 0.0
    %427 = vmatpush.msra.mxu0 0.0
    %428 = vmatpush.msra.mxu0 0.0
    %429 = vmatpush.msra.mxu0 %v51
    %430 = vmatpush.msra.mxu0 %v50
    %431 = vmatmul.f32.gmra.mxu0 %v413
    %v432 = vpop.f32.mrf.mxu0
    %v433 = vadd.f32 0.0, %v432
    %434 = vdwg.mxu0
    %436 = vrot.lane.b32.xlu0 %v433, 64
    %v437 = vpop.permute.xlu0 %436
    %v439 = vadd.f32 %v409, %v437
    %v440 = vadd.f32 %v439, %v112
    %v441 = vtanh.pop %v440
    %v442 = vmul.f32 %v441, %v118
    %v443 = vadd.f32 %v442, %v123
    %v444 = vmul.f32 %v443, %v401
    %446 = vrot.lane.b32.xlu0 %v443, 80
    %v447 = vpop.permute.xlu0 %446
    %v449 = vmul.f32 %v443, %v447
    %451 = vrot.lane.b32.xlu0 %v449, 16
    %v452 = vpop.permute.xlu0 %451
    %v454 = vadd.f32 %v444, %v452
    %v455 = vtanh.pop %v454
    %457 = vrot.lane.b32.xlu0 %v455, 16
    %v458 = vpop.permute.xlu0 %457
    %v460 = vmul.f32 %v443, %v458
    %s461 = scalar_lea.vmem [#allocation2], 192
    %v462 = vld [vmem:[%s461] sm:$0xff]
    %464 = vrot.lane.b32.xlu0 %v460, 32
    %v465 = vpop.permute.xlu0 %464
    %v466 = vsel %vm82, %v465, 0
    %468 = vmatpush.msra.mxu0 0.0
    %469 = vmatpush.msra.mxu0 0.0
    %470 = vmatpush.msra.mxu0 0.0
    %471 = vmatpush.msra.mxu0 0.0
    %472 = vmatpush.msra.mxu0 0.0
    %473 = vmatpush.msra.mxu0 0.0
    %474 = vmatpush.msra.mxu0 0.0
    %475 = vmatpush.msra.mxu0 0.0
    %476 = vmatpush.msra.mxu0 0.0
    %477 = vmatpush.msra.mxu0 0.0
    %478 = vmatpush.msra.mxu0 0.0
    %479 = vmatpush.msra.mxu0 0.0
    %480 = vmatpush.msra.mxu0 0.0
    %481 = vmatpush.msra.mxu0 0.0
    %482 = vmatpush.msra.mxu0 %v51
    %483 = vmatpush.msra.mxu0 %v50
    %484 = vmatmul.f32.gmra.mxu0 %v466
    %v485 = vpop.f32.mrf.mxu0
    %v486 = vadd.f32 0.0, %v485
    %487 = vdwg.mxu0
    %489 = vrot.lane.b32.xlu0 %v486, 64
    %v490 = vpop.permute.xlu0 %489
    %v492 = vadd.f32 %v462, %v490
    %v493 = vadd.f32 %v492, %v112
    %v494 = vtanh.pop %v493
    %v495 = vmul.f32 %v494, %v118
    %v496 = vadd.f32 %v495, %v123
    %v497 = vmul.f32 %v496, %v454
    %499 = vrot.lane.b32.xlu0 %v496, 80
    %v500 = vpop.permute.xlu0 %499
    %v502 = vmul.f32 %v496, %v500
    %504 = vrot.lane.b32.xlu0 %v502, 16
    %v505 = vpop.permute.xlu0 %504
    %v507 = vadd.f32 %v497, %v505
    %v508 = vtanh.pop %v507
    %510 = vrot.lane.b32.xlu0 %v508, 16
    %v511 = vpop.permute.xlu0 %510
    %v513 = vmul.f32 %v496, %v511
    %s514 = scalar_lea.vmem [#allocation2], 184
    %v515 = vld [vmem:[%s514] sm:$0xff]
    %517 = vrot.lane.b32.xlu0 %v513, 32
    %v518 = vpop.permute.xlu0 %517
    %v519 = vsel %vm82, %v518, 0
    %521 = vmatpush.msra.mxu0 0.0
    %522 = vmatpush.msra.mxu0 0.0
    %523 = vmatpush.msra.mxu0 0.0
    %524 = vmatpush.msra.mxu0 0.0
    %525 = vmatpush.msra.mxu0 0.0
    %526 = vmatpush.msra.mxu0 0.0
    %527 = vmatpush.msra.mxu0 0.0
    %528 = vmatpush.msra.mxu0 0.0
    %529 = vmatpush.msra.mxu0 0.0
    %530 = vmatpush.msra.mxu0 0.0
    %531 = vmatpush.msra.mxu0 0.0
    %532 = vmatpush.msra.mxu0 0.0
    %533 = vmatpush.msra.mxu0 0.0
    %534 = vmatpush.msra.mxu0 0.0
    %535 = vmatpush.msra.mxu0 %v51
    %536 = vmatpush.msra.mxu0 %v50
    %537 = vmatmul.f32.gmra.mxu0 %v519
    %v538 = vpop.f32.mrf.mxu0
    %v539 = vadd.f32 0.0, %v538
    %540 = vdwg.mxu0
    %542 = vrot.lane.b32.xlu0 %v539, 64
    %v543 = vpop.permute.xlu0 %542
    %v545 = vadd.f32 %v515, %v543
    %v546 = vadd.f32 %v545, %v112
    %v547 = vtanh.pop %v546
    %v548 = vmul.f32 %v547, %v118
    %v549 = vadd.f32 %v548, %v123
    %v550 = vmul.f32 %v549, %v507
    %552 = vrot.lane.b32.xlu0 %v549, 80
    %v553 = vpop.permute.xlu0 %552
    %v555 = vmul.f32 %v549, %v553
    %557 = vrot.lane.b32.xlu0 %v555, 16
    %v558 = vpop.permute.xlu0 %557
    %v560 = vadd.f32 %v550, %v558
    %v561 = vtanh.pop %v560
    %563 = vrot.lane.b32.xlu0 %v561, 16
    %v564 = vpop.permute.xlu0 %563
    %v566 = vmul.f32 %v549, %v564
    %s567 = scalar_lea.vmem [#allocation2], 176
    %v568 = vld [vmem:[%s567] sm:$0xff]
    %570 = vrot.lane.b32.xlu0 %v566, 32
    %v571 = vpop.permute.xlu0 %570
    %v572 = vsel %vm82, %v571, 0
    %574 = vmatpush.msra.mxu0 0.0
    %575 = vmatpush.msra.mxu0 0.0
    %576 = vmatpush.msra.mxu0 0.0
    %577 = vmatpush.msra.mxu0 0.0
    %578 = vmatpush.msra.mxu0 0.0
    %579 = vmatpush.msra.mxu0 0.0
    %580 = vmatpush.msra.mxu0 0.0
    %581 = vmatpush.msra.mxu0 0.0
    %582 = vmatpush.msra.mxu0 0.0
    %583 = vmatpush.msra.mxu0 0.0
    %584 = vmatpush.msra.mxu0 0.0
    %585 = vmatpush.msra.mxu0 0.0
    %586 = vmatpush.msra.mxu0 0.0
    %587 = vmatpush.msra.mxu0 0.0
    %588 = vmatpush.msra.mxu0 %v51
    %589 = vmatpush.msra.mxu0 %v50
    %590 = vmatmul.f32.gmra.mxu0 %v572
    %v591 = vpop.f32.mrf.mxu0
    %v592 = vadd.f32 0.0, %v591
    %593 = vdwg.mxu0
    %595 = vrot.lane.b32.xlu0 %v592, 64
    %v596 = vpop.permute.xlu0 %595
    %v598 = vadd.f32 %v568, %v596
    %v599 = vadd.f32 %v598, %v112
    %v600 = vtanh.pop %v599
    %v601 = vmul.f32 %v600, %v118
    %v602 = vadd.f32 %v601, %v123
    %v603 = vmul.f32 %v602, %v560
    %605 = vrot.lane.b32.xlu0 %v602, 80
    %v606 = vpop.permute.xlu0 %605
    %v608 = vmul.f32 %v602, %v606
    %610 = vrot.lane.b32.xlu0 %v608, 16
    %v611 = vpop.permute.xlu0 %610
    %v613 = vadd.f32 %v603, %v611
    %v614 = vtanh.pop %v613
    %616 = vrot.lane.b32.xlu0 %v614, 16
    %v617 = vpop.permute.xlu0 %616
    %v619 = vmul.f32 %v602, %v617
    %s620 = scalar_lea.vmem [#allocation2], 168
    %v621 = vld [vmem:[%s620] sm:$0xff]
    %623 = vrot.lane.b32.xlu0 %v619, 32
    %v624 = vpop.permute.xlu0 %623
    %v625 = vsel %vm82, %v624, 0
    %627 = vmatpush.msra.mxu0 0.0
    %628 = vmatpush.msra.mxu0 0.0
    %629 = vmatpush.msra.mxu0 0.0
    %630 = vmatpush.msra.mxu0 0.0
    %631 = vmatpush.msra.mxu0 0.0
    %632 = vmatpush.msra.mxu0 0.0
    %633 = vmatpush.msra.mxu0 0.0
    %634 = vmatpush.msra.mxu0 0.0
    %635 = vmatpush.msra.mxu0 0.0
    %636 = vmatpush.msra.mxu0 0.0
    %637 = vmatpush.msra.mxu0 0.0
    %638 = vmatpush.msra.mxu0 0.0
    %639 = vmatpush.msra.mxu0 0.0
    %640 = vmatpush.msra.mxu0 0.0
    %641 = vmatpush.msra.mxu0 %v51
    %642 = vmatpush.msra.mxu0 %v50
    %643 = vmatmul.f32.gmra.mxu0 %v625
    %v644 = vpop.f32.mrf.mxu0
    %v645 = vadd.f32 0.0, %v644
    %646 = vdwg.mxu0
    %648 = vrot.lane.b32.xlu0 %v645, 64
    %v649 = vpop.permute.xlu0 %648
    %v651 = vadd.f32 %v621, %v649
    %v652 = vadd.f32 %v651, %v112
    %v653 = vtanh.pop %v652
    %v654 = vmul.f32 %v653, %v118
    %v655 = vadd.f32 %v654, %v123
    %v656 = vmul.f32 %v655, %v613
    %658 = vrot.lane.b32.xlu0 %v655, 80
    %v659 = vpop.permute.xlu0 %658
    %v661 = vmul.f32 %v655, %v659
    %663 = vrot.lane.b32.xlu0 %v661, 16
    %v664 = vpop.permute.xlu0 %663
    %v666 = vadd.f32 %v656, %v664
    %v667 = vtanh.pop %v666
    %669 = vrot.lane.b32.xlu0 %v667, 16
    %v670 = vpop.permute.xlu0 %669
    %v672 = vmul.f32 %v655, %v670
    %s673 = scalar_lea.vmem [#allocation2], 160
    %v674 = vld [vmem:[%s673] sm:$0xff]
    %676 = vrot.lane.b32.xlu0 %v672, 32
    %v677 = vpop.permute.xlu0 %676
    %v678 = vsel %vm82, %v677, 0
    %680 = vmatpush.msra.mxu0 0.0
    %681 = vmatpush.msra.mxu0 0.0
    %682 = vmatpush.msra.mxu0 0.0
    %683 = vmatpush.msra.mxu0 0.0
    %684 = vmatpush.msra.mxu0 0.0
    %685 = vmatpush.msra.mxu0 0.0
    %686 = vmatpush.msra.mxu0 0.0
    %687 = vmatpush.msra.mxu0 0.0
    %688 = vmatpush.msra.mxu0 0.0
    %689 = vmatpush.msra.mxu0 0.0
    %690 = vmatpush.msra.mxu0 0.0
    %691 = vmatpush.msra.mxu0 0.0
    %692 = vmatpush.msra.mxu0 0.0
    %693 = vmatpush.msra.mxu0 0.0
    %694 = vmatpush.msra.mxu0 %v51
    %695 = vmatpush.msra.mxu0 %v50
    %696 = vmatmul.f32.gmra.mxu0 %v678
    %v697 = vpop.f32.mrf.mxu0
    %v698 = vadd.f32 0.0, %v697
    %699 = vdwg.mxu0
    %701 = vrot.lane.b32.xlu0 %v698, 64
    %v702 = vpop.permute.xlu0 %701
    %v704 = vadd.f32 %v674, %v702
    %v705 = vadd.f32 %v704, %v112
    %v706 = vtanh.pop %v705
    %v707 = vmul.f32 %v706, %v118
    %v708 = vadd.f32 %v707, %v123
    %v709 = vmul.f32 %v708, %v666
    %711 = vrot.lane.b32.xlu0 %v708, 80
    %v712 = vpop.permute.xlu0 %711
    %v714 = vmul.f32 %v708, %v712
    %716 = vrot.lane.b32.xlu0 %v714, 16
    %v717 = vpop.permute.xlu0 %716
    %v719 = vadd.f32 %v709, %v717
    %v720 = vtanh.pop %v719
    %722 = vrot.lane.b32.xlu0 %v720, 16
    %v723 = vpop.permute.xlu0 %722
    %v725 = vmul.f32 %v708, %v723
    %s726 = scalar_lea.vmem [#allocation2], 152
    %v727 = vld [vmem:[%s726] sm:$0xff]
    %729 = vrot.lane.b32.xlu0 %v725, 32
    %v730 = vpop.permute.xlu0 %729
    %v731 = vsel %vm82, %v730, 0
    %733 = vmatpush.msra.mxu0 0.0
    %734 = vmatpush.msra.mxu0 0.0
    %735 = vmatpush.msra.mxu0 0.0
    %736 = vmatpush.msra.mxu0 0.0
    %737 = vmatpush.msra.mxu0 0.0
    %738 = vmatpush.msra.mxu0 0.0
    %739 = vmatpush.msra.mxu0 0.0
    %740 = vmatpush.msra.mxu0 0.0
    %741 = vmatpush.msra.mxu0 0.0
    %742 = vmatpush.msra.mxu0 0.0
    %743 = vmatpush.msra.mxu0 0.0
    %744 = vmatpush.msra.mxu0 0.0
    %745 = vmatpush.msra.mxu0 0.0
    %746 = vmatpush.msra.mxu0 0.0
    %747 = vmatpush.msra.mxu0 %v51
    %748 = vmatpush.msra.mxu0 %v50
    %749 = vmatmul.f32.gmra.mxu0 %v731
    %v750 = vpop.f32.mrf.mxu0
    %v751 = vadd.f32 0.0, %v750
    %752 = vdwg.mxu0
    %754 = vrot.lane.b32.xlu0 %v751, 64
    %v755 = vpop.permute.xlu0 %754
    %v757 = vadd.f32 %v727, %v755
    %v758 = vadd.f32 %v757, %v112
    %v759 = vtanh.pop %v758
    %v760 = vmul.f32 %v759, %v118
    %v761 = vadd.f32 %v760, %v123
    %v762 = vmul.f32 %v761, %v719
    %764 = vrot.lane.b32.xlu0 %v761, 80
    %v765 = vpop.permute.xlu0 %764
    %v767 = vmul.f32 %v761, %v765
    %769 = vrot.lane.b32.xlu0 %v767, 16
    %v770 = vpop.permute.xlu0 %769
    %v772 = vadd.f32 %v762, %v770
    %v773 = vtanh.pop %v772
    %775 = vrot.lane.b32.xlu0 %v773, 16
    %v776 = vpop.permute.xlu0 %775
    %v778 = vmul.f32 %v761, %v776
    %s779 = scalar_lea.vmem [#allocation2], 144
    %v780 = vld [vmem:[%s779] sm:$0xff]
    %782 = vrot.lane.b32.xlu0 %v778, 32
    %v783 = vpop.permute.xlu0 %782
    %v784 = vsel %vm82, %v783, 0
    %786 = vmatpush.msra.mxu0 0.0
    %787 = vmatpush.msra.mxu0 0.0
    %788 = vmatpush.msra.mxu0 0.0
    %789 = vmatpush.msra.mxu0 0.0
    %790 = vmatpush.msra.mxu0 0.0
    %791 = vmatpush.msra.mxu0 0.0
    %792 = vmatpush.msra.mxu0 0.0
    %793 = vmatpush.msra.mxu0 0.0
    %794 = vmatpush.msra.mxu0 0.0
    %795 = vmatpush.msra.mxu0 0.0
    %796 = vmatpush.msra.mxu0 0.0
    %797 = vmatpush.msra.mxu0 0.0
    %798 = vmatpush.msra.mxu0 0.0
    %799 = vmatpush.msra.mxu0 0.0
    %800 = vmatpush.msra.mxu0 %v51
    %801 = vmatpush.msra.mxu0 %v50
    %802 = vmatmul.f32.gmra.mxu0 %v784
    %v803 = vpop.f32.mrf.mxu0
    %v804 = vadd.f32 0.0, %v803
    %805 = vdwg.mxu0
    %807 = vrot.lane.b32.xlu0 %v804, 64
    %v808 = vpop.permute.xlu0 %807
    %v810 = vadd.f32 %v780, %v808
    %v811 = vadd.f32 %v810, %v112
    %v812 = vtanh.pop %v811
    %v813 = vmul.f32 %v812, %v118
    %v814 = vadd.f32 %v813, %v123
    %v815 = vmul.f32 %v814, %v772
    %817 = vrot.lane.b32.xlu0 %v814, 80
    %v818 = vpop.permute.xlu0 %817
    %v820 = vmul.f32 %v814, %v818
    %822 = vrot.lane.b32.xlu0 %v820, 16
    %v823 = vpop.permute.xlu0 %822
    %v825 = vadd.f32 %v815, %v823
    %v826 = vtanh.pop %v825
    %828 = vrot.lane.b32.xlu0 %v826, 16
    %v829 = vpop.permute.xlu0 %828
    %v831 = vmul.f32 %v814, %v829
    %s832 = scalar_lea.vmem [#allocation2], 136
    %v833 = vld [vmem:[%s832] sm:$0xff]
    %835 = vrot.lane.b32.xlu0 %v831, 32
    %v836 = vpop.permute.xlu0 %835
    %v837 = vsel %vm82, %v836, 0
    %839 = vmatpush.msra.mxu0 0.0
    %840 = vmatpush.msra.mxu0 0.0
    %841 = vmatpush.msra.mxu0 0.0
    %842 = vmatpush.msra.mxu0 0.0
    %843 = vmatpush.msra.mxu0 0.0
    %844 = vmatpush.msra.mxu0 0.0
    %845 = vmatpush.msra.mxu0 0.0
    %846 = vmatpush.msra.mxu0 0.0
    %847 = vmatpush.msra.mxu0 0.0
    %848 = vmatpush.msra.mxu0 0.0
    %849 = vmatpush.msra.mxu0 0.0
    %850 = vmatpush.msra.mxu0 0.0
    %851 = vmatpush.msra.mxu0 0.0
    %852 = vmatpush.msra.mxu0 0.0
    %853 = vmatpush.msra.mxu0 %v51
    %854 = vmatpush.msra.mxu0 %v50
    %855 = vmatmul.f32.gmra.mxu0 %v837
    %v856 = vpop.f32.mrf.mxu0
    %v857 = vadd.f32 0.0, %v856
    %858 = vdwg.mxu0
    %860 = vrot.lane.b32.xlu0 %v857, 64
    %v861 = vpop.permute.xlu0 %860
    %v863 = vadd.f32 %v833, %v861
    %v864 = vadd.f32 %v863, %v112
    %v865 = vtanh.pop %v864
    %v866 = vmul.f32 %v865, %v118
    %v867 = vadd.f32 %v866, %v123
    %v868 = vmul.f32 %v867, %v825
    %870 = vrot.lane.b32.xlu0 %v867, 80
    %v871 = vpop.permute.xlu0 %870
    %v873 = vmul.f32 %v867, %v871
    %875 = vrot.lane.b32.xlu0 %v873, 16
    %v876 = vpop.permute.xlu0 %875
    %v878 = vadd.f32 %v868, %v876
    %v879 = vtanh.pop %v878
    %881 = vrot.lane.b32.xlu0 %v879, 16
    %v882 = vpop.permute.xlu0 %881
    %v884 = vmul.f32 %v867, %v882
    %s885 = scalar_lea.vmem [#allocation2], 128
    %v886 = vld [vmem:[%s885] sm:$0xff]
    %888 = vrot.lane.b32.xlu0 %v884, 32
    %v889 = vpop.permute.xlu0 %888
    %v890 = vsel %vm82, %v889, 0
    %892 = vmatpush.msra.mxu0 0.0
    %893 = vmatpush.msra.mxu0 0.0
    %894 = vmatpush.msra.mxu0 0.0
    %895 = vmatpush.msra.mxu0 0.0
    %896 = vmatpush.msra.mxu0 0.0
    %897 = vmatpush.msra.mxu0 0.0
    %898 = vmatpush.msra.mxu0 0.0
    %899 = vmatpush.msra.mxu0 0.0
    %900 = vmatpush.msra.mxu0 0.0
    %901 = vmatpush.msra.mxu0 0.0
    %902 = vmatpush.msra.mxu0 0.0
    %903 = vmatpush.msra.mxu0 0.0
    %904 = vmatpush.msra.mxu0 0.0
    %905 = vmatpush.msra.mxu0 0.0
    %906 = vmatpush.msra.mxu0 %v51
    %907 = vmatpush.msra.mxu0 %v50
    %908 = vmatmul.f32.gmra.mxu0 %v890
    %v909 = vpop.f32.mrf.mxu0
    %v910 = vadd.f32 0.0, %v909
    %911 = vdwg.mxu0
    %913 = vrot.lane.b32.xlu0 %v910, 64
    %v914 = vpop.permute.xlu0 %913
    %v916 = vadd.f32 %v886, %v914
    %v917 = vadd.f32 %v916, %v112
    %v918 = vtanh.pop %v917
    %v919 = vmul.f32 %v918, %v118
    %v920 = vadd.f32 %v919, %v123
    %v921 = vmul.f32 %v920, %v878
    %923 = vrot.lane.b32.xlu0 %v920, 80
    %v924 = vpop.permute.xlu0 %923
    %v926 = vmul.f32 %v920, %v924
    %928 = vrot.lane.b32.xlu0 %v926, 16
    %v929 = vpop.permute.xlu0 %928
    %v931 = vadd.f32 %v921, %v929
    %v932 = vtanh.pop %v931
    %934 = vrot.lane.b32.xlu0 %v932, 16
    %v935 = vpop.permute.xlu0 %934
    %v937 = vmul.f32 %v920, %v935
    %s938 = scalar_lea.vmem [#allocation2], 120
    %v939 = vld [vmem:[%s938] sm:$0xff]
    %941 = vrot.lane.b32.xlu0 %v937, 32
    %v942 = vpop.permute.xlu0 %941
    %v943 = vsel %vm82, %v942, 0
    %945 = vmatpush.msra.mxu0 0.0
    %946 = vmatpush.msra.mxu0 0.0
    %947 = vmatpush.msra.mxu0 0.0
    %948 = vmatpush.msra.mxu0 0.0
    %949 = vmatpush.msra.mxu0 0.0
    %950 = vmatpush.msra.mxu0 0.0
    %951 = vmatpush.msra.mxu0 0.0
    %952 = vmatpush.msra.mxu0 0.0
    %953 = vmatpush.msra.mxu0 0.0
    %954 = vmatpush.msra.mxu0 0.0
    %955 = vmatpush.msra.mxu0 0.0
    %956 = vmatpush.msra.mxu0 0.0
    %957 = vmatpush.msra.mxu0 0.0
    %958 = vmatpush.msra.mxu0 0.0
    %959 = vmatpush.msra.mxu0 %v51
    %960 = vmatpush.msra.mxu0 %v50
    %961 = vmatmul.f32.gmra.mxu0 %v943
    %v962 = vpop.f32.mrf.mxu0
    %v963 = vadd.f32 0.0, %v962
    %964 = vdwg.mxu0
    %966 = vrot.lane.b32.xlu0 %v963, 64
    %v967 = vpop.permute.xlu0 %966
    %v969 = vadd.f32 %v939, %v967
    %v970 = vadd.f32 %v969, %v112
    %v971 = vtanh.pop %v970
    %v972 = vmul.f32 %v971, %v118
    %v973 = vadd.f32 %v972, %v123
    %v974 = vmul.f32 %v973, %v931
    %976 = vrot.lane.b32.xlu0 %v973, 80
    %v977 = vpop.permute.xlu0 %976
    %v979 = vmul.f32 %v973, %v977
    %981 = vrot.lane.b32.xlu0 %v979, 16
    %v982 = vpop.permute.xlu0 %981
    %v984 = vadd.f32 %v974, %v982
    %v985 = vtanh.pop %v984
    %987 = vrot.lane.b32.xlu0 %v985, 16
    %v988 = vpop.permute.xlu0 %987
    %v990 = vmul.f32 %v973, %v988
    %s991 = scalar_lea.vmem [#allocation2], 112
    %v992 = vld [vmem:[%s991] sm:$0xff]
    %994 = vrot.lane.b32.xlu0 %v990, 32
    %v995 = vpop.permute.xlu0 %994
    %v996 = vsel %vm82, %v995, 0
    %998 = vmatpush.msra.mxu0 0.0
    %999 = vmatpush.msra.mxu0 0.0
    %1000 = vmatpush.msra.mxu0 0.0
    %1001 = vmatpush.msra.mxu0 0.0
    %1002 = vmatpush.msra.mxu0 0.0
    %1003 = vmatpush.msra.mxu0 0.0
    %1004 = vmatpush.msra.mxu0 0.0
    %1005 = vmatpush.msra.mxu0 0.0
    %1006 = vmatpush.msra.mxu0 0.0
    %1007 = vmatpush.msra.mxu0 0.0
    %1008 = vmatpush.msra.mxu0 0.0
    %1009 = vmatpush.msra.mxu0 0.0
    %1010 = vmatpush.msra.mxu0 0.0
    %1011 = vmatpush.msra.mxu0 0.0
    %1012 = vmatpush.msra.mxu0 %v51
    %1013 = vmatpush.msra.mxu0 %v50
    %1014 = vmatmul.f32.gmra.mxu0 %v996
    %v1015 = vpop.f32.mrf.mxu0
    %v1016 = vadd.f32 0.0, %v1015
    %1017 = vdwg.mxu0
    %1019 = vrot.lane.b32.xlu0 %v1016, 64
    %v1020 = vpop.permute.xlu0 %1019
    %v1022 = vadd.f32 %v992, %v1020
    %v1023 = vadd.f32 %v1022, %v112
    %v1024 = vtanh.pop %v1023
    %v1025 = vmul.f32 %v1024, %v118
    %v1026 = vadd.f32 %v1025, %v123
    %v1027 = vmul.f32 %v1026, %v984
    %1029 = vrot.lane.b32.xlu0 %v1026, 80
    %v1030 = vpop.permute.xlu0 %1029
    %v1032 = vmul.f32 %v1026, %v1030
    %1034 = vrot.lane.b32.xlu0 %v1032, 16
    %v1035 = vpop.permute.xlu0 %1034
    %v1037 = vadd.f32 %v1027, %v1035
    %v1038 = vtanh.pop %v1037
    %1040 = vrot.lane.b32.xlu0 %v1038, 16
    %v1041 = vpop.permute.xlu0 %1040
    %v1043 = vmul.f32 %v1026, %v1041
    %s1044 = scalar_lea.vmem [#allocation2], 104
    %v1045 = vld [vmem:[%s1044] sm:$0xff]
    %1047 = vrot.lane.b32.xlu0 %v1043, 32
    %v1048 = vpop.permute.xlu0 %1047
    %v1049 = vsel %vm82, %v1048, 0
    %1051 = vmatpush.msra.mxu0 0.0
    %1052 = vmatpush.msra.mxu0 0.0
    %1053 = vmatpush.msra.mxu0 0.0
    %1054 = vmatpush.msra.mxu0 0.0
    %1055 = vmatpush.msra.mxu0 0.0
    %1056 = vmatpush.msra.mxu0 0.0
    %1057 = vmatpush.msra.mxu0 0.0
    %1058 = vmatpush.msra.mxu0 0.0
    %1059 = vmatpush.msra.mxu0 0.0
    %1060 = vmatpush.msra.mxu0 0.0
    %1061 = vmatpush.msra.mxu0 0.0
    %1062 = vmatpush.msra.mxu0 0.0
    %1063 = vmatpush.msra.mxu0 0.0
    %1064 = vmatpush.msra.mxu0 0.0
    %1065 = vmatpush.msra.mxu0 %v51
    %1066 = vmatpush.msra.mxu0 %v50
    %1067 = vmatmul.f32.gmra.mxu0 %v1049
    %v1068 = vpop.f32.mrf.mxu0
    %v1069 = vadd.f32 0.0, %v1068
    %1070 = vdwg.mxu0
    %1072 = vrot.lane.b32.xlu0 %v1069, 64
    %v1073 = vpop.permute.xlu0 %1072
    %v1075 = vadd.f32 %v1045, %v1073
    %v1076 = vadd.f32 %v1075, %v112
    %v1077 = vtanh.pop %v1076
    %v1078 = vmul.f32 %v1077, %v118
    %v1079 = vadd.f32 %v1078, %v123
    %v1080 = vmul.f32 %v1079, %v1037
    %1082 = vrot.lane.b32.xlu0 %v1079, 80
    %v1083 = vpop.permute.xlu0 %1082
    %v1085 = vmul.f32 %v1079, %v1083
    %1087 = vrot.lane.b32.xlu0 %v1085, 16
    %v1088 = vpop.permute.xlu0 %1087
    %v1090 = vadd.f32 %v1080, %v1088
    %v1091 = vtanh.pop %v1090
    %1093 = vrot.lane.b32.xlu0 %v1091, 16
    %v1094 = vpop.permute.xlu0 %1093
    %v1096 = vmul.f32 %v1079, %v1094
    %s1097 = scalar_lea.vmem [#allocation2], 96
    %v1098 = vld [vmem:[%s1097] sm:$0xff]
    %1100 = vrot.lane.b32.xlu0 %v1096, 32
    %v1101 = vpop.permute.xlu0 %1100
    %v1102 = vsel %vm82, %v1101, 0
    %1104 = vmatpush.msra.mxu0 0.0
    %1105 = vmatpush.msra.mxu0 0.0
    %1106 = vmatpush.msra.mxu0 0.0
    %1107 = vmatpush.msra.mxu0 0.0
    %1108 = vmatpush.msra.mxu0 0.0
    %1109 = vmatpush.msra.mxu0 0.0
    %1110 = vmatpush.msra.mxu0 0.0
    %1111 = vmatpush.msra.mxu0 0.0
    %1112 = vmatpush.msra.mxu0 0.0
    %1113 = vmatpush.msra.mxu0 0.0
    %1114 = vmatpush.msra.mxu0 0.0
    %1115 = vmatpush.msra.mxu0 0.0
    %1116 = vmatpush.msra.mxu0 0.0
    %1117 = vmatpush.msra.mxu0 0.0
    %1118 = vmatpush.msra.mxu0 %v51
    %1119 = vmatpush.msra.mxu0 %v50
    %1120 = vmatmul.f32.gmra.mxu0 %v1102
    %v1121 = vpop.f32.mrf.mxu0
    %v1122 = vadd.f32 0.0, %v1121
    %1123 = vdwg.mxu0
    %1125 = vrot.lane.b32.xlu0 %v1122, 64
    %v1126 = vpop.permute.xlu0 %1125
    %v1128 = vadd.f32 %v1098, %v1126
    %v1129 = vadd.f32 %v1128, %v112
    %v1130 = vtanh.pop %v1129
    %v1131 = vmul.f32 %v1130, %v118
    %v1132 = vadd.f32 %v1131, %v123
    %v1133 = vmul.f32 %v1132, %v1090
    %1135 = vrot.lane.b32.xlu0 %v1132, 80
    %v1136 = vpop.permute.xlu0 %1135
    %v1138 = vmul.f32 %v1132, %v1136
    %1140 = vrot.lane.b32.xlu0 %v1138, 16
    %v1141 = vpop.permute.xlu0 %1140
    %v1143 = vadd.f32 %v1133, %v1141
    %v1144 = vtanh.pop %v1143
    %1146 = vrot.lane.b32.xlu0 %v1144, 16
    %v1147 = vpop.permute.xlu0 %1146
    %v1149 = vmul.f32 %v1132, %v1147
    %s1150 = scalar_lea.vmem [#allocation2], 88
    %v1151 = vld [vmem:[%s1150] sm:$0xff]
    %1153 = vrot.lane.b32.xlu0 %v1149, 32
    %v1154 = vpop.permute.xlu0 %1153
    %v1155 = vsel %vm82, %v1154, 0
    %1157 = vmatpush.msra.mxu0 0.0
    %1158 = vmatpush.msra.mxu0 0.0
    %1159 = vmatpush.msra.mxu0 0.0
    %1160 = vmatpush.msra.mxu0 0.0
    %1161 = vmatpush.msra.mxu0 0.0
    %1162 = vmatpush.msra.mxu0 0.0
    %1163 = vmatpush.msra.mxu0 0.0
    %1164 = vmatpush.msra.mxu0 0.0
    %1165 = vmatpush.msra.mxu0 0.0
    %1166 = vmatpush.msra.mxu0 0.0
    %1167 = vmatpush.msra.mxu0 0.0
    %1168 = vmatpush.msra.mxu0 0.0
    %1169 = vmatpush.msra.mxu0 0.0
    %1170 = vmatpush.msra.mxu0 0.0
    %1171 = vmatpush.msra.mxu0 %v51
    %1172 = vmatpush.msra.mxu0 %v50
    %1173 = vmatmul.f32.gmra.mxu0 %v1155
    %v1174 = vpop.f32.mrf.mxu0
    %v1175 = vadd.f32 0.0, %v1174
    %1176 = vdwg.mxu0
    %1178 = vrot.lane.b32.xlu0 %v1175, 64
    %v1179 = vpop.permute.xlu0 %1178
    %v1181 = vadd.f32 %v1151, %v1179
    %v1182 = vadd.f32 %v1181, %v112
    %v1183 = vtanh.pop %v1182
    %v1184 = vmul.f32 %v1183, %v118
    %v1185 = vadd.f32 %v1184, %v123
    %v1186 = vmul.f32 %v1185, %v1143
    %1188 = vrot.lane.b32.xlu0 %v1185, 80
    %v1189 = vpop.permute.xlu0 %1188
    %v1191 = vmul.f32 %v1185, %v1189
    %1193 = vrot.lane.b32.xlu0 %v1191, 16
    %v1194 = vpop.permute.xlu0 %1193
    %v1196 = vadd.f32 %v1186, %v1194
    %v1197 = vtanh.pop %v1196
    %1199 = vrot.lane.b32.xlu0 %v1197, 16
    %v1200 = vpop.permute.xlu0 %1199
    %v1202 = vmul.f32 %v1185, %v1200
    %s1203 = scalar_lea.vmem [#allocation2], 80
    %v1204 = vld [vmem:[%s1203] sm:$0xff]
    %1206 = vrot.lane.b32.xlu0 %v1202, 32
    %v1207 = vpop.permute.xlu0 %1206
    %v1208 = vsel %vm82, %v1207, 0
    %1210 = vmatpush.msra.mxu0 0.0
    %1211 = vmatpush.msra.mxu0 0.0
    %1212 = vmatpush.msra.mxu0 0.0
    %1213 = vmatpush.msra.mxu0 0.0
    %1214 = vmatpush.msra.mxu0 0.0
    %1215 = vmatpush.msra.mxu0 0.0
    %1216 = vmatpush.msra.mxu0 0.0
    %1217 = vmatpush.msra.mxu0 0.0
    %1218 = vmatpush.msra.mxu0 0.0
    %1219 = vmatpush.msra.mxu0 0.0
    %1220 = vmatpush.msra.mxu0 0.0
    %1221 = vmatpush.msra.mxu0 0.0
    %1222 = vmatpush.msra.mxu0 0.0
    %1223 = vmatpush.msra.mxu0 0.0
    %1224 = vmatpush.msra.mxu0 %v51
    %1225 = vmatpush.msra.mxu0 %v50
    %1226 = vmatmul.f32.gmra.mxu0 %v1208
    %v1227 = vpop.f32.mrf.mxu0
    %v1228 = vadd.f32 0.0, %v1227
    %1229 = vdwg.mxu0
    %1231 = vrot.lane.b32.xlu0 %v1228, 64
    %v1232 = vpop.permute.xlu0 %1231
    %v1234 = vadd.f32 %v1204, %v1232
    %v1235 = vadd.f32 %v1234, %v112
    %v1236 = vtanh.pop %v1235
    %v1237 = vmul.f32 %v1236, %v118
    %v1238 = vadd.f32 %v1237, %v123
    %v1239 = vmul.f32 %v1238, %v1196
    %1241 = vrot.lane.b32.xlu0 %v1238, 80
    %v1242 = vpop.permute.xlu0 %1241
    %v1244 = vmul.f32 %v1238, %v1242
    %1246 = vrot.lane.b32.xlu0 %v1244, 16
    %v1247 = vpop.permute.xlu0 %1246
    %v1249 = vadd.f32 %v1239, %v1247
    %v1250 = vtanh.pop %v1249
    %1252 = vrot.lane.b32.xlu0 %v1250, 16
    %v1253 = vpop.permute.xlu0 %1252
    %v1255 = vmul.f32 %v1238, %v1253
    %s1256 = scalar_lea.vmem [#allocation2], 72
    %v1257 = vld [vmem:[%s1256] sm:$0xff]
    %1259 = vrot.lane.b32.xlu0 %v1255, 32
    %v1260 = vpop.permute.xlu0 %1259
    %v1261 = vsel %vm82, %v1260, 0
    %1263 = vmatpush.msra.mxu0 0.0
    %1264 = vmatpush.msra.mxu0 0.0
    %1265 = vmatpush.msra.mxu0 0.0
    %1266 = vmatpush.msra.mxu0 0.0
    %1267 = vmatpush.msra.mxu0 0.0
    %1268 = vmatpush.msra.mxu0 0.0
    %1269 = vmatpush.msra.mxu0 0.0
    %1270 = vmatpush.msra.mxu0 0.0
    %1271 = vmatpush.msra.mxu0 0.0
    %1272 = vmatpush.msra.mxu0 0.0
    %1273 = vmatpush.msra.mxu0 0.0
    %1274 = vmatpush.msra.mxu0 0.0
    %1275 = vmatpush.msra.mxu0 0.0
    %1276 = vmatpush.msra.mxu0 0.0
    %1277 = vmatpush.msra.mxu0 %v51
    %1278 = vmatpush.msra.mxu0 %v50
    %1279 = vmatmul.f32.gmra.mxu0 %v1261
    %v1280 = vpop.f32.mrf.mxu0
    %v1281 = vadd.f32 0.0, %v1280
    %1282 = vdwg.mxu0
    %1284 = vrot.lane.b32.xlu0 %v1281, 64
    %v1285 = vpop.permute.xlu0 %1284
    %v1287 = vadd.f32 %v1257, %v1285
    %v1288 = vadd.f32 %v1287, %v112
    %v1289 = vtanh.pop %v1288
    %v1290 = vmul.f32 %v1289, %v118
    %v1291 = vadd.f32 %v1290, %v123
    %v1292 = vmul.f32 %v1291, %v1249
    %1294 = vrot.lane.b32.xlu0 %v1291, 80
    %v1295 = vpop.permute.xlu0 %1294
    %v1297 = vmul.f32 %v1291, %v1295
    %1299 = vrot.lane.b32.xlu0 %v1297, 16
    %v1300 = vpop.permute.xlu0 %1299
    %v1302 = vadd.f32 %v1292, %v1300
    %v1303 = vtanh.pop %v1302
    %1305 = vrot.lane.b32.xlu0 %v1303, 16
    %v1306 = vpop.permute.xlu0 %1305
    %v1308 = vmul.f32 %v1291, %v1306
    %s1309 = scalar_lea.vmem [#allocation2], 64
    %v1310 = vld [vmem:[%s1309] sm:$0xff]
    %1312 = vrot.lane.b32.xlu0 %v1308, 32
    %v1313 = vpop.permute.xlu0 %1312
    %v1314 = vsel %vm82, %v1313, 0
    %1316 = vmatpush.msra.mxu0 0.0
    %1317 = vmatpush.msra.mxu0 0.0
    %1318 = vmatpush.msra.mxu0 0.0
    %1319 = vmatpush.msra.mxu0 0.0
    %1320 = vmatpush.msra.mxu0 0.0
    %1321 = vmatpush.msra.mxu0 0.0
    %1322 = vmatpush.msra.mxu0 0.0
    %1323 = vmatpush.msra.mxu0 0.0
    %1324 = vmatpush.msra.mxu0 0.0
    %1325 = vmatpush.msra.mxu0 0.0
    %1326 = vmatpush.msra.mxu0 0.0
    %1327 = vmatpush.msra.mxu0 0.0
    %1328 = vmatpush.msra.mxu0 0.0
    %1329 = vmatpush.msra.mxu0 0.0
    %1330 = vmatpush.msra.mxu0 %v51
    %1331 = vmatpush.msra.mxu0 %v50
    %1332 = vmatmul.f32.gmra.mxu0 %v1314
    %v1333 = vpop.f32.mrf.mxu0
    %v1334 = vadd.f32 0.0, %v1333
    %1335 = vdwg.mxu0
    %1337 = vrot.lane.b32.xlu0 %v1334, 64
    %v1338 = vpop.permute.xlu0 %1337
    %v1340 = vadd.f32 %v1310, %v1338
    %v1341 = vadd.f32 %v1340, %v112
    %v1342 = vtanh.pop %v1341
    %v1343 = vmul.f32 %v1342, %v118
    %v1344 = vadd.f32 %v1343, %v123
    %v1345 = vmul.f32 %v1344, %v1302
    %1347 = vrot.lane.b32.xlu0 %v1344, 80
    %v1348 = vpop.permute.xlu0 %1347
    %v1350 = vmul.f32 %v1344, %v1348
    %1352 = vrot.lane.b32.xlu0 %v1350, 16
    %v1353 = vpop.permute.xlu0 %1352
    %v1355 = vadd.f32 %v1345, %v1353
    %v1356 = vtanh.pop %v1355
    %1358 = vrot.lane.b32.xlu0 %v1356, 16
    %v1359 = vpop.permute.xlu0 %1358
    %v1361 = vmul.f32 %v1344, %v1359
    %s1362 = scalar_lea.vmem [#allocation2], 56
    %v1363 = vld [vmem:[%s1362] sm:$0xff]
    %1365 = vrot.lane.b32.xlu0 %v1361, 32
    %v1366 = vpop.permute.xlu0 %1365
    %v1367 = vsel %vm82, %v1366, 0
    %1369 = vmatpush.msra.mxu0 0.0
    %1370 = vmatpush.msra.mxu0 0.0
    %1371 = vmatpush.msra.mxu0 0.0
    %1372 = vmatpush.msra.mxu0 0.0
    %1373 = vmatpush.msra.mxu0 0.0
    %1374 = vmatpush.msra.mxu0 0.0
    %1375 = vmatpush.msra.mxu0 0.0
    %1376 = vmatpush.msra.mxu0 0.0
    %1377 = vmatpush.msra.mxu0 0.0
    %1378 = vmatpush.msra.mxu0 0.0
    %1379 = vmatpush.msra.mxu0 0.0
    %1380 = vmatpush.msra.mxu0 0.0
    %1381 = vmatpush.msra.mxu0 0.0
    %1382 = vmatpush.msra.mxu0 0.0
    %1383 = vmatpush.msra.mxu0 %v51
    %1384 = vmatpush.msra.mxu0 %v50
    %1385 = vmatmul.f32.gmra.mxu0 %v1367
    %v1386 = vpop.f32.mrf.mxu0
    %v1387 = vadd.f32 0.0, %v1386
    %1388 = vdwg.mxu0
    %1390 = vrot.lane.b32.xlu0 %v1387, 64
    %v1391 = vpop.permute.xlu0 %1390
    %v1393 = vadd.f32 %v1363, %v1391
    %v1394 = vadd.f32 %v1393, %v112
    %v1395 = vtanh.pop %v1394
    %v1396 = vmul.f32 %v1395, %v118
    %v1397 = vadd.f32 %v1396, %v123
    %v1398 = vmul.f32 %v1397, %v1355
    %1400 = vrot.lane.b32.xlu0 %v1397, 80
    %v1401 = vpop.permute.xlu0 %1400
    %v1403 = vmul.f32 %v1397, %v1401
    %1405 = vrot.lane.b32.xlu0 %v1403, 16
    %v1406 = vpop.permute.xlu0 %1405
    %v1408 = vadd.f32 %v1398, %v1406
    %v1409 = vtanh.pop %v1408
    %1411 = vrot.lane.b32.xlu0 %v1409, 16
    %v1412 = vpop.permute.xlu0 %1411
    %v1414 = vmul.f32 %v1397, %v1412
    %s1415 = scalar_lea.vmem [#allocation2], 48
    %v1416 = vld [vmem:[%s1415] sm:$0xff]
    %1418 = vrot.lane.b32.xlu0 %v1414, 32
    %v1419 = vpop.permute.xlu0 %1418
    %v1420 = vsel %vm82, %v1419, 0
    %1422 = vmatpush.msra.mxu0 0.0
    %1423 = vmatpush.msra.mxu0 0.0
    %1424 = vmatpush.msra.mxu0 0.0
    %1425 = vmatpush.msra.mxu0 0.0
    %1426 = vmatpush.msra.mxu0 0.0
    %1427 = vmatpush.msra.mxu0 0.0
    %1428 = vmatpush.msra.mxu0 0.0
    %1429 = vmatpush.msra.mxu0 0.0
    %1430 = vmatpush.msra.mxu0 0.0
    %1431 = vmatpush.msra.mxu0 0.0
    %1432 = vmatpush.msra.mxu0 0.0
    %1433 = vmatpush.msra.mxu0 0.0
    %1434 = vmatpush.msra.mxu0 0.0
    %1435 = vmatpush.msra.mxu0 0.0
    %1436 = vmatpush.msra.mxu0 %v51
    %1437 = vmatpush.msra.mxu0 %v50
    %1438 = vmatmul.f32.gmra.mxu0 %v1420
    %v1439 = vpop.f32.mrf.mxu0
    %v1440 = vadd.f32 0.0, %v1439
    %1441 = vdwg.mxu0
    %1443 = vrot.lane.b32.xlu0 %v1440, 64
    %v1444 = vpop.permute.xlu0 %1443
    %v1446 = vadd.f32 %v1416, %v1444
    %v1447 = vadd.f32 %v1446, %v112
    %v1448 = vtanh.pop %v1447
    %v1449 = vmul.f32 %v1448, %v118
    %v1450 = vadd.f32 %v1449, %v123
    %v1451 = vmul.f32 %v1450, %v1408
    %1453 = vrot.lane.b32.xlu0 %v1450, 80
    %v1454 = vpop.permute.xlu0 %1453
    %v1456 = vmul.f32 %v1450, %v1454
    %1458 = vrot.lane.b32.xlu0 %v1456, 16
    %v1459 = vpop.permute.xlu0 %1458
    %v1461 = vadd.f32 %v1451, %v1459
    %v1462 = vtanh.pop %v1461
    %1464 = vrot.lane.b32.xlu0 %v1462, 16
    %v1465 = vpop.permute.xlu0 %1464
    %v1467 = vmul.f32 %v1450, %v1465
    %s1468 = scalar_lea.vmem [#allocation2], 40
    %v1469 = vld [vmem:[%s1468] sm:$0xff]
    %1471 = vrot.lane.b32.xlu0 %v1467, 32
    %v1472 = vpop.permute.xlu0 %1471
    %v1473 = vsel %vm82, %v1472, 0
    %1475 = vmatpush.msra.mxu0 0.0
    %1476 = vmatpush.msra.mxu0 0.0
    %1477 = vmatpush.msra.mxu0 0.0
    %1478 = vmatpush.msra.mxu0 0.0
    %1479 = vmatpush.msra.mxu0 0.0
    %1480 = vmatpush.msra.mxu0 0.0
    %1481 = vmatpush.msra.mxu0 0.0
    %1482 = vmatpush.msra.mxu0 0.0
    %1483 = vmatpush.msra.mxu0 0.0
    %1484 = vmatpush.msra.mxu0 0.0
    %1485 = vmatpush.msra.mxu0 0.0
    %1486 = vmatpush.msra.mxu0 0.0
    %1487 = vmatpush.msra.mxu0 0.0
    %1488 = vmatpush.msra.mxu0 0.0
    %1489 = vmatpush.msra.mxu0 %v51
    %1490 = vmatpush.msra.mxu0 %v50
    %1491 = vmatmul.f32.gmra.mxu0 %v1473
    %v1492 = vpop.f32.mrf.mxu0
    %v1493 = vadd.f32 0.0, %v1492
    %1494 = vdwg.mxu0
    %1496 = vrot.lane.b32.xlu0 %v1493, 64
    %v1497 = vpop.permute.xlu0 %1496
    %v1499 = vadd.f32 %v1469, %v1497
    %v1500 = vadd.f32 %v1499, %v112
    %v1501 = vtanh.pop %v1500
    %v1502 = vmul.f32 %v1501, %v118
    %v1503 = vadd.f32 %v1502, %v123
    %v1504 = vmul.f32 %v1503, %v1461
    %1506 = vrot.lane.b32.xlu0 %v1503, 80
    %v1507 = vpop.permute.xlu0 %1506
    %v1509 = vmul.f32 %v1503, %v1507
    %1511 = vrot.lane.b32.xlu0 %v1509, 16
    %v1512 = vpop.permute.xlu0 %1511
    %v1514 = vadd.f32 %v1504, %v1512
    %v1515 = vtanh.pop %v1514
    %1517 = vrot.lane.b32.xlu0 %v1515, 16
    %v1518 = vpop.permute.xlu0 %1517
    %v1520 = vmul.f32 %v1503, %v1518
    %s1521 = scalar_lea.vmem [#allocation2], 32
    %v1522 = vld [vmem:[%s1521] sm:$0xff]
    %1524 = vrot.lane.b32.xlu0 %v1520, 32
    %v1525 = vpop.permute.xlu0 %1524
    %v1526 = vsel %vm82, %v1525, 0
    %1528 = vmatpush.msra.mxu0 0.0
    %1529 = vmatpush.msra.mxu0 0.0
    %1530 = vmatpush.msra.mxu0 0.0
    %1531 = vmatpush.msra.mxu0 0.0
    %1532 = vmatpush.msra.mxu0 0.0
    %1533 = vmatpush.msra.mxu0 0.0
    %1534 = vmatpush.msra.mxu0 0.0
    %1535 = vmatpush.msra.mxu0 0.0
    %1536 = vmatpush.msra.mxu0 0.0
    %1537 = vmatpush.msra.mxu0 0.0
    %1538 = vmatpush.msra.mxu0 0.0
    %1539 = vmatpush.msra.mxu0 0.0
    %1540 = vmatpush.msra.mxu0 0.0
    %1541 = vmatpush.msra.mxu0 0.0
    %1542 = vmatpush.msra.mxu0 %v51
    %1543 = vmatpush.msra.mxu0 %v50
    %1544 = vmatmul.f32.gmra.mxu0 %v1526
    %v1545 = vpop.f32.mrf.mxu0
    %v1546 = vadd.f32 0.0, %v1545
    %1547 = vdwg.mxu0
    %1549 = vrot.lane.b32.xlu0 %v1546, 64
    %v1550 = vpop.permute.xlu0 %1549
    %v1552 = vadd.f32 %v1522, %v1550
    %v1553 = vadd.f32 %v1552, %v112
    %v1554 = vtanh.pop %v1553
    %v1555 = vmul.f32 %v1554, %v118
    %v1556 = vadd.f32 %v1555, %v123
    %v1557 = vmul.f32 %v1556, %v1514
    %1559 = vrot.lane.b32.xlu0 %v1556, 80
    %v1560 = vpop.permute.xlu0 %1559
    %v1562 = vmul.f32 %v1556, %v1560
    %1564 = vrot.lane.b32.xlu0 %v1562, 16
    %v1565 = vpop.permute.xlu0 %1564
    %v1567 = vadd.f32 %v1557, %v1565
    %v1568 = vtanh.pop %v1567
    %1570 = vrot.lane.b32.xlu0 %v1568, 16
    %v1571 = vpop.permute.xlu0 %1570
    %v1573 = vmul.f32 %v1556, %v1571
    %s1574 = scalar_lea.vmem [#allocation2], 24
    %v1575 = vld [vmem:[%s1574] sm:$0xff]
    %1577 = vrot.lane.b32.xlu0 %v1573, 32
    %v1578 = vpop.permute.xlu0 %1577
    %v1579 = vsel %vm82, %v1578, 0
    %1581 = vmatpush.msra.mxu0 0.0
    %1582 = vmatpush.msra.mxu0 0.0
    %1583 = vmatpush.msra.mxu0 0.0
    %1584 = vmatpush.msra.mxu0 0.0
    %1585 = vmatpush.msra.mxu0 0.0
    %1586 = vmatpush.msra.mxu0 0.0
    %1587 = vmatpush.msra.mxu0 0.0
    %1588 = vmatpush.msra.mxu0 0.0
    %1589 = vmatpush.msra.mxu0 0.0
    %1590 = vmatpush.msra.mxu0 0.0
    %1591 = vmatpush.msra.mxu0 0.0
    %1592 = vmatpush.msra.mxu0 0.0
    %1593 = vmatpush.msra.mxu0 0.0
    %1594 = vmatpush.msra.mxu0 0.0
    %1595 = vmatpush.msra.mxu0 %v51
    %1596 = vmatpush.msra.mxu0 %v50
    %1597 = vmatmul.f32.gmra.mxu0 %v1579
    %v1598 = vpop.f32.mrf.mxu0
    %v1599 = vadd.f32 0.0, %v1598
    %1600 = vdwg.mxu0
    %1602 = vrot.lane.b32.xlu0 %v1599, 64
    %v1603 = vpop.permute.xlu0 %1602
    %v1605 = vadd.f32 %v1575, %v1603
    %v1606 = vadd.f32 %v1605, %v112
    %v1607 = vtanh.pop %v1606
    %v1608 = vmul.f32 %v1607, %v118
    %v1609 = vadd.f32 %v1608, %v123
    %v1610 = vmul.f32 %v1609, %v1567
    %1612 = vrot.lane.b32.xlu0 %v1609, 80
    %v1613 = vpop.permute.xlu0 %1612
    %v1615 = vmul.f32 %v1609, %v1613
    %1617 = vrot.lane.b32.xlu0 %v1615, 16
    %v1618 = vpop.permute.xlu0 %1617
    %v1620 = vadd.f32 %v1610, %v1618
    %v1621 = vtanh.pop %v1620
    %1623 = vrot.lane.b32.xlu0 %v1621, 16
    %v1624 = vpop.permute.xlu0 %1623
    %v1626 = vmul.f32 %v1609, %v1624
    %s1627 = scalar_lea.vmem [#allocation2], 16
    %v1628 = vld [vmem:[%s1627] sm:$0xff]
    %1630 = vrot.lane.b32.xlu0 %v1626, 32
    %v1631 = vpop.permute.xlu0 %1630
    %v1632 = vsel %vm82, %v1631, 0
    %1634 = vmatpush.msra.mxu0 0.0
    %1635 = vmatpush.msra.mxu0 0.0
    %1636 = vmatpush.msra.mxu0 0.0
    %1637 = vmatpush.msra.mxu0 0.0
    %1638 = vmatpush.msra.mxu0 0.0
    %1639 = vmatpush.msra.mxu0 0.0
    %1640 = vmatpush.msra.mxu0 0.0
    %1641 = vmatpush.msra.mxu0 0.0
    %1642 = vmatpush.msra.mxu0 0.0
    %1643 = vmatpush.msra.mxu0 0.0
    %1644 = vmatpush.msra.mxu0 0.0
    %1645 = vmatpush.msra.mxu0 0.0
    %1646 = vmatpush.msra.mxu0 0.0
    %1647 = vmatpush.msra.mxu0 0.0
    %1648 = vmatpush.msra.mxu0 %v51
    %1649 = vmatpush.msra.mxu0 %v50
    %1650 = vmatmul.f32.gmra.mxu0 %v1632
    %v1651 = vpop.f32.mrf.mxu0
    %v1652 = vadd.f32 0.0, %v1651
    %1653 = vdwg.mxu0
    %1655 = vrot.lane.b32.xlu0 %v1652, 64
    %v1656 = vpop.permute.xlu0 %1655
    %v1658 = vadd.f32 %v1628, %v1656
    %v1659 = vadd.f32 %v1658, %v112
    %v1660 = vtanh.pop %v1659
    %v1661 = vmul.f32 %v1660, %v118
    %v1662 = vadd.f32 %v1661, %v123
    %v1663 = vmul.f32 %v1662, %v1620
    %1665 = vrot.lane.b32.xlu0 %v1662, 80
    %v1666 = vpop.permute.xlu0 %1665
    %v1668 = vmul.f32 %v1662, %v1666
    %1670 = vrot.lane.b32.xlu0 %v1668, 16
    %v1671 = vpop.permute.xlu0 %1670
    %v1673 = vadd.f32 %v1663, %v1671
    %v1674 = vtanh.pop %v1673
    %1676 = vrot.lane.b32.xlu0 %v1674, 16
    %v1677 = vpop.permute.xlu0 %1676
    %v1679 = vmul.f32 %v1662, %v1677
    %s1680 = scalar_lea.vmem [#allocation2], 8
    %v1681 = vld [vmem:[%s1680] sm:$0xff]
    %1683 = vrot.lane.b32.xlu0 %v1679, 32
    %v1684 = vpop.permute.xlu0 %1683
    %v1685 = vsel %vm82, %v1684, 0
    %1687 = vmatpush.msra.mxu0 0.0
    %1688 = vmatpush.msra.mxu0 0.0
    %1689 = vmatpush.msra.mxu0 0.0
    %1690 = vmatpush.msra.mxu0 0.0
    %1691 = vmatpush.msra.mxu0 0.0
    %1692 = vmatpush.msra.mxu0 0.0
    %1693 = vmatpush.msra.mxu0 0.0
    %1694 = vmatpush.msra.mxu0 0.0
    %1695 = vmatpush.msra.mxu0 0.0
    %1696 = vmatpush.msra.mxu0 0.0
    %1697 = vmatpush.msra.mxu0 0.0
    %1698 = vmatpush.msra.mxu0 0.0
    %1699 = vmatpush.msra.mxu0 0.0
    %1700 = vmatpush.msra.mxu0 0.0
    %1701 = vmatpush.msra.mxu0 %v51
    %1702 = vmatpush.msra.mxu0 %v50
    %1703 = vmatmul.f32.gmra.mxu0 %v1685
    %v1704 = vpop.f32.mrf.mxu0
    %v1705 = vadd.f32 0.0, %v1704
    %1706 = vdwg.mxu0
    %1708 = vrot.lane.b32.xlu0 %v1705, 64
    %v1709 = vpop.permute.xlu0 %1708
    %v1711 = vadd.f32 %v1681, %v1709
    %v1712 = vadd.f32 %v1711, %v112
    %v1713 = vtanh.pop %v1712
    %v1714 = vmul.f32 %v1713, %v118
    %v1715 = vadd.f32 %v1714, %v123
    %v1716 = vmul.f32 %v1715, %v1673
    %1718 = vrot.lane.b32.xlu0 %v1715, 80
    %v1719 = vpop.permute.xlu0 %1718
    %v1721 = vmul.f32 %v1715, %v1719
    %1723 = vrot.lane.b32.xlu0 %v1721, 16
    %v1724 = vpop.permute.xlu0 %1723
    %v1726 = vadd.f32 %v1716, %v1724
    %v1727 = vtanh.pop %v1726
    %1729 = vrot.lane.b32.xlu0 %v1727, 16
    %v1730 = vpop.permute.xlu0 %1729
    %v1732 = vmul.f32 %v1715, %v1730
    %1734 = vrot.lane.b32.xlu0 %v1732, 32
    %v1735 = vpop.permute.xlu0 %1734
    %v1736 = vsel %vm82, %v1735, 0
    %1738 = vmatpush.msra.mxu0 0.0
    %1739 = vmatpush.msra.mxu0 0.0
    %1740 = vmatpush.msra.mxu0 0.0
    %1741 = vmatpush.msra.mxu0 0.0
    %1742 = vmatpush.msra.mxu0 0.0
    %1743 = vmatpush.msra.mxu0 0.0
    %1744 = vmatpush.msra.mxu0 0.0
    %1745 = vmatpush.msra.mxu0 0.0
    %1746 = vmatpush.msra.mxu0 0.0
    %1747 = vmatpush.msra.mxu0 0.0
    %1748 = vmatpush.msra.mxu0 0.0
    %1749 = vmatpush.msra.mxu0 0.0
    %1750 = vmatpush.msra.mxu0 0.0
    %1751 = vmatpush.msra.mxu0 0.0
    %1752 = vmatpush.msra.mxu0 %v51
    %1753 = vmatpush.msra.mxu0 %v50
    %1754 = vmatmul.f32.gmra.mxu0 %v1736
    %v1755 = vpop.f32.mrf.mxu0
    %v1756 = vadd.f32 0.0, %v1755
    %1757 = vdwg.mxu0
    %1759 = vrot.lane.b32.xlu0 %v1756, 64
    %v1760 = vpop.permute.xlu0 %1759
    %v1762 = vadd.f32 %v64, %v1760
    %v1763 = vadd.f32 %v1762, %v112
    %v1764 = vtanh.pop %v1763
    %v1765 = vmul.f32 %v1764, %v118
    %v1766 = vadd.f32 %v1765, %v123
    %v1767 = vmul.f32 %v1766, %v1726
    %1769 = vrot.lane.b32.xlu0 %v1766, 80
    %v1770 = vpop.permute.xlu0 %1769
    %v1772 = vmul.f32 %v1766, %v1770
    %1774 = vrot.lane.b32.xlu0 %v1772, 16
    %v1775 = vpop.permute.xlu0 %1774
    %v1777 = vadd.f32 %v1767, %v1775
    %v1778 = vtanh.pop %v1777
    %1780 = vrot.lane.b32.xlu0 %v1778, 16
    %v1781 = vpop.permute.xlu0 %1780
    %v1783 = vmul.f32 %v1766, %v1781
    %1785 = vrot.lane.b32.xlu0 %v79, 96
    %v1786 = vpop.permute.xlu0 %1785
    %1789 = vrot.lane.b32.xlu0 %v1783, 48
    %v1790 = vpop.permute.xlu0 %1789
    %v1792 = vsel %vm82, %v1786, %v1790
    %vm1793 = vcmask 261120
    %1794 = vst.msk [vmem:[#allocation7] sm:$0xff] %vm1793, %v1792
    // Predicated region
    $region26: #{tpu_custom_call.1} parent=1 // pred_check
      _
    $region27: #{tpu_custom_call.1} parent=1 // pred_check_branch
      %1796 = sbr.rel (0) target = $region29
    $region28: #{tpu_custom_call.1} parent=1 // pred_region
      %1798 = vsyncadd [#allocation4], 0
      %s1800 = sshll.u32 [#allocation7], 4
      %s1801 = int_to_ptr.vmem [resolvable:$true] %s1800
      %s1802 = sshll.u32 %s4, 4
      %s1803 = int_to_ptr.hbm [resolvable:$true] %s1802
      %1805 = dma.vmem_to_hbm [thread:$0]  %s1801, 128, %s1803, [#allocation4]
    $region29: #{tpu_custom_call.1} parent=1 // pred_fallthru
      _
    // Predicated region
    $region30: #{tpu_custom_call.1} parent=1 // pred_check
      _
    $region31: #{tpu_custom_call.1} parent=1 // pred_check_branch
      %1807 = sbr.rel (0) target = $region33
    $region32: #{tpu_custom_call.1} parent=1 // pred_region
      %1809 = dma.done [#allocation4], 128
    $region33: #{tpu_custom_call.1} parent=1 // pred_fallthru
      _
    %1810 = vsyncpa [#allocation3], 1
    %1811 = vsyncpa [#allocation6], 1
    %1812 = vsyncpa [#allocation4], 1

</llo_original>
